<compile_context>
chip_gen: v6e
topology: v6e:2x2x1
jax: 0.10.0
libtpu: 0.0.40
codegen_flags: <defaults>
</compile_context>

<pallas_src>
import jax
import jax.numpy as jnp
from jax.experimental import pallas as pl
from jax.experimental.pallas import tpu as pltpu

D_MODEL = 32
N_HEADS = 4
HEAD_DIM = D_MODEL // N_HEADS
D_FF = 64
SEQ = 8
BATCH = 2
LN_EPS = 1e-5
DROPOUT_RATE = 0.1  # inference mode -> dropout is identity
VEC_WIDTH = 128     # lane-aligned width of the bias/scale slab


def _layer_norm(z, gamma, beta, eps):
    # PyTorch nn.LayerNorm: biased variance over the last dim.
    mean = jnp.mean(z, axis=-1, keepdims=True)
    var = jnp.mean(jnp.square(z - mean), axis=-1, keepdims=True)
    return (z - mean) * jax.lax.rsqrt(var + eps) * gamma + beta


def init_params(key, d_model=D_MODEL, d_ff=D_FF, dtype=jnp.float32):
    ks = jax.random.split(key, 6)
    s_m = 1.0 / (d_model ** 0.5)
    s_f = 1.0 / (d_ff ** 0.5)
    return {
        "wq": jax.random.normal(ks[0], (d_model, d_model), dtype) * s_m,
        "bq": jnp.zeros((1, d_model), dtype),
        "wk": jax.random.normal(ks[1], (d_model, d_model), dtype) * s_m,
        "bk": jnp.zeros((1, d_model), dtype),
        "wv": jax.random.normal(ks[2], (d_model, d_model), dtype) * s_m,
        "bv": jnp.zeros((1, d_model), dtype),
        "wo": jax.random.normal(ks[3], (d_model, d_model), dtype) * s_m,
        "bo": jnp.zeros((1, d_model), dtype),
        "g1": jnp.ones((1, d_model), dtype),
        "beta1": jnp.zeros((1, d_model), dtype),
        "wff1": jax.random.normal(ks[4], (d_model, d_ff), dtype) * s_m,
        "bff1": jnp.zeros((1, d_ff), dtype),
        "wff2": jax.random.normal(ks[5], (d_ff, d_model), dtype) * s_f,
        "bff2": jnp.zeros((1, d_model), dtype),
        "g2": jnp.ones((1, d_model), dtype),
        "beta2": jnp.zeros((1, d_model), dtype),
    }


def pack_params(params, d_model=D_MODEL, d_ff=D_FF):
    """Pack the 16 parameter tensors into 3 slabs (fewer, larger DMAs).

    The attention scale 1/sqrt(head_dim) is folded into Wq / bq here (free:
    these arrays are re-materialized by the concatenation anyway), so the
    kernel needs no separate scaling op on q.
    """
    scale = 1.0 / (HEAD_DIM ** 0.5)
    # Weight slab columns: [Wq*s | Wk | Wv | Wo | Wff1] -> (d_model, 4*d_model + d_ff)
    w_slab = jnp.concatenate(
        [params["wq"] * scale, params["wk"], params["wv"], params["wo"],
         params["wff1"]],
        axis=1,
    )
    wff2 = params["wff2"]  # (d_ff, d_model)

    def row(v):
        v = jnp.asarray(v).reshape(-1)
        return jnp.pad(v, (0, VEC_WIDTH - v.shape[0]))

    bqkv = jnp.concatenate(
        [params["bq"].reshape(-1) * scale,
         params["bk"].reshape(-1),
         params["bv"].reshape(-1)]
    )
    vec_slab = jnp.stack(
        [
            row(bqkv),             # 0: fused qkv bias (3*d_model, q part pre-scaled)
            row(params["bo"]),     # 1
            row(params["g1"]),     # 2
            row(params["beta1"]),  # 3
            row(params["bff1"]),   # 4 (d_ff wide)
            row(params["bff2"]),   # 5
            row(params["g2"]),     # 6
            row(params["beta2"]),  # 7
        ]
    )  # (8, VEC_WIDTH)
    return w_slab, wff2, vec_slab


def encoder_block(x, params):
    B, N, D = x.shape
    assert D == D_MODEL
    BN = B * N
    H, Hd, Dff = N_HEADS, HEAD_DIM, D_FF

    w_slab, wff2, vec_slab = pack_params(params)

    def kernel(x_ref, w_ref, wff2_ref, vec_ref, o_ref):
        xs = x_ref[...].astype(jnp.float32)      # (BN, D) token-major slab
        w = w_ref[...].astype(jnp.float32)       # (D, 4D + Dff)
        vec = vec_ref[...].astype(jnp.float32)   # (8, VEC_WIDTH) bias/scale rows

        # --- fused QKV projection: one MXU push, one bias add (q pre-scaled) ---
        qkv = (jnp.dot(xs, w[:, 0:3 * D], preferred_element_type=jnp.float32)
               + vec[0:1, 0:3 * D])
        q = qkv[:, 0:D]
        k = qkv[:, D:2 * D]
        v = qkv[:, 2 * D:3 * D]
        wo = w[:, 3 * D:4 * D]                   # (D, D) output projection

        # --- multi-head self-attention, batched over B inside each head ---
        attn = None
        for h in range(H):  # static unroll: N_HEADS is a compile-time constant
            sl = slice(h * Hd, (h + 1) * Hd)
            qh = q[:, sl].reshape(B, N, Hd)
            kh = k[:, sl].reshape(B, N, Hd)
            vh = v[:, sl].reshape(B, N, Hd)
            s = jnp.einsum("bqd,bkd->bqk", qh, kh,
                           preferred_element_type=jnp.float32)        # (B, N, N)
            s = s - jnp.max(s, axis=-1, keepdims=True)
            p = jnp.exp(s)
            p = p * pl.reciprocal(jnp.sum(p, axis=-1, keepdims=True), approx=True)
            oh = jnp.einsum("bqk,bkd->bqd", p, vh,
                            preferred_element_type=jnp.float32)       # (B, N, Hd)
            # Fold the output projection into the head loop: accumulate
            # oh @ Wo[rows of this head] instead of concatenating head outputs.
            contrib = jnp.dot(oh.reshape(BN, Hd), wo[sl, :],
                              preferred_element_type=jnp.float32)     # (BN, D)
            attn = contrib if attn is None else attn + contrib
        attn = attn + vec[1:2, 0:D]              # + bo

        # dropout (identity at inference) -> LayerNorm (no residual in reference)
        x1 = _layer_norm(attn, vec[2:3, 0:D], vec[3:4, 0:D], LN_EPS)

        # --- position-wise FFN: Linear -> ReLU -> Linear ---
        h1 = jnp.dot(x1, w[:, 4 * D:4 * D + Dff],
                     preferred_element_type=jnp.float32) + vec[4:5, 0:Dff]
        h1 = jnp.maximum(h1, 0.0)
        ff = jnp.dot(h1, wff2_ref[...].astype(jnp.float32),
                     preferred_element_type=jnp.float32) + vec[5:6, 0:D]

        # dropout (identity) -> LayerNorm
        out = _layer_norm(ff, vec[6:7, 0:D], vec[7:8, 0:D], LN_EPS)
        o_ref[...] = out.astype(o_ref.dtype)

    out2 = pl.pallas_call(
        kernel,
        out_shape=jax.ShapeDtypeStruct((BN, D), x.dtype),
        grid_spec=pltpu.PrefetchScalarGridSpec(
            num_scalar_prefetch=0,
            grid=(1,),  # whole batch in a single step: per-step overhead paid once
            in_specs=[
                pl.BlockSpec((BN, D), lambda i: (0, 0)),
                pl.BlockSpec(w_slab.shape, lambda i: (0, 0)),
                pl.BlockSpec(wff2.shape, lambda i: (0, 0)),
                pl.BlockSpec(vec_slab.shape, lambda i: (0, 0)),
            ],
            out_specs=pl.BlockSpec((BN, D), lambda i: (0, 0)),
        ),
        compiler_params=pltpu.CompilerParams(
            dimension_semantics=("arbitrary",),
        ),
    )(x.reshape(BN, D), w_slab, wff2, vec_slab)
    return out2.reshape(B, N, D)


def _reference(x, params):
    """Pure-JAX reference mirroring the PyTorch module semantics."""
    q = x @ params["wq"] + params["bq"]
    k = x @ params["wk"] + params["bk"]
    v = x @ params["wv"] + params["bv"]
    B, N, D = x.shape
    qh = q.reshape(B, N, N_HEADS, HEAD_DIM).transpose(0, 2, 1, 3)
    kh = k.reshape(B, N, N_HEADS, HEAD_DIM).transpose(0, 2, 1, 3)
    vh = v.reshape(B, N, N_HEADS, HEAD_DIM).transpose(0, 2, 1, 3)
    s = jnp.einsum("bhqd,bhkd->bhqk", qh, kh) / (HEAD_DIM ** 0.5)
    p = jax.nn.softmax(s, axis=-1)
    o = jnp.einsum("bhqk,bhkd->bhqd", p, vh).transpose(0, 2, 1, 3).reshape(B, N, D)
    attn = o @ params["wo"] + params["bo"]

    def ln(z, g, b):
        m = jnp.mean(z, axis=-1, keepdims=True)
        var = jnp.mean((z - m) ** 2, axis=-1, keepdims=True)
        return (z - m) / jnp.sqrt(var + LN_EPS) * g + b

    x1 = ln(attn, params["g1"], params["beta1"])
    h1 = jnp.maximum(x1 @ params["wff1"] + params["bff1"], 0.0)
    ff = h1 @ params["wff2"] + params["bff2"]
    return ln(ff, params["g2"], params["beta2"])


if __name__ == "__main__":
    key = jax.random.PRNGKey(0)
    kx, kp = jax.random.split(key)
    x = jax.random.normal(kx, (BATCH, SEQ, D_MODEL), jnp.float32)
    params = init_params(kp)

    out = encoder_block(x, params)
    out = jax.block_until_ready(out)

    ref = _reference(x, params)
    assert out.shape == (BATCH, SEQ, D_MODEL)
    # Tolerance loosened slightly vs exact math because the softmax denominator uses
    # the EUP approximate reciprocal (pl.reciprocal(..., approx=True)).
    assert jnp.allclose(out, ref, atol=2e-2, rtol=2e-2), "mismatch vs JAX reference"

    print("KERNEL_OK")
</pallas_src>

<mosaic_0001>
module attributes {stable_mosaic.version = 11 : i64} {
  func.func @kernel(%arg0: i32, %arg1: memref<16x32xf32, #tpu.memory_space<vmem>>, %arg2: memref<32x192xf32, #tpu.memory_space<vmem>>, %arg3: memref<64x32xf32, #tpu.memory_space<vmem>>, %arg4: memref<8x128xf32, #tpu.memory_space<vmem>>, %arg5: memref<16x32xf32, #tpu.memory_space<vmem>>) attributes {dimension_semantics = [#tpu.dimension_semantics<arbitrary>], iteration_bounds = array<i64: 1>, scalar_prefetch = 0 : i64, scratch_operands = 0 : i64, tpu.core_type = #tpu.core_type<tc>, window_params = [{pipeline_mode = #tpu.pipeline_mode<synchronous>, transform_indices = @transform_0, window_bounds = array<i64: 16, 32>}, {pipeline_mode = #tpu.pipeline_mode<synchronous>, transform_indices = @transform_1, window_bounds = array<i64: 32, 192>}, {pipeline_mode = #tpu.pipeline_mode<synchronous>, transform_indices = @transform_2, window_bounds = array<i64: 64, 32>}, {pipeline_mode = #tpu.pipeline_mode<synchronous>, transform_indices = @transform_3, window_bounds = array<i64: 8, 128>}, {pipeline_mode = #tpu.pipeline_mode<synchronous>, transform_indices = @transform_4, window_bounds = array<i64: 16, 32>}]} {
    %c0 = arith.constant 0 : index
    %c0_0 = arith.constant 0 : index
    %0 = vector.load %arg1[%c0, %c0_0] : memref<16x32xf32, #tpu.memory_space<vmem>>, vector<16x32xf32>
    %c0_1 = arith.constant 0 : index
    %c0_2 = arith.constant 0 : index
    %1 = vector.load %arg2[%c0_1, %c0_2] : memref<32x192xf32, #tpu.memory_space<vmem>>, vector<32x192xf32>
    %c0_3 = arith.constant 0 : index
    %c0_4 = arith.constant 0 : index
    %2 = vector.load %arg4[%c0_3, %c0_4] : memref<8x128xf32, #tpu.memory_space<vmem>>, vector<8x128xf32>
    %3 = vector.extract_strided_slice %1 {offsets = [0, 0], sizes = [32, 96], strides = [1, 1]} : vector<32x192xf32> to vector<32x96xf32>
    %cst = arith.constant dense<0.000000e+00> : vector<16x96xf32>
    %4 = tpu.matmul %0, %3, %cst {dimension_numbers = #tpu.dot_dimension_numbers<[1], [0], [0], [1], [0, 0, 1, 1], [], []>} : vector<16x32xf32>, vector<32x96xf32>, vector<16x96xf32> -> vector<16x96xf32>
    %5 = vector.extract_strided_slice %2 {offsets = [0, 0], sizes = [1, 96], strides = [1, 1]} : vector<8x128xf32> to vector<1x96xf32>
    %6 = vector.broadcast %5 : vector<1x96xf32> to vector<16x96xf32>
    %7 = arith.addf %4, %6 : vector<16x96xf32>
    %8 = vector.extract_strided_slice %7 {offsets = [0, 0], sizes = [16, 32], strides = [1, 1]} : vector<16x96xf32> to vector<16x32xf32>
    %9 = vector.extract_strided_slice %7 {offsets = [0, 32], sizes = [16, 32], strides = [1, 1]} : vector<16x96xf32> to vector<16x32xf32>
    %10 = vector.extract_strided_slice %7 {offsets = [0, 64], sizes = [16, 32], strides = [1, 1]} : vector<16x96xf32> to vector<16x32xf32>
    %11 = vector.extract_strided_slice %1 {offsets = [0, 96], sizes = [32, 32], strides = [1, 1]} : vector<32x192xf32> to vector<32x32xf32>
    %12 = vector.extract_strided_slice %8 {offsets = [0, 0], sizes = [16, 8], strides = [1, 1]} : vector<16x32xf32> to vector<16x8xf32>
    %13 = vector.shape_cast %12 : vector<16x8xf32> to vector<2x8x8xf32>
    %14 = vector.extract_strided_slice %9 {offsets = [0, 0], sizes = [16, 8], strides = [1, 1]} : vector<16x32xf32> to vector<16x8xf32>
    %15 = vector.shape_cast %14 : vector<16x8xf32> to vector<2x8x8xf32>
    %16 = vector.extract_strided_slice %10 {offsets = [0, 0], sizes = [16, 8], strides = [1, 1]} : vector<16x32xf32> to vector<16x8xf32>
    %17 = vector.shape_cast %16 : vector<16x8xf32> to vector<2x8x8xf32>
    "tpu.trace_start"() <{level = 10 : i32, message = "bqd,bkd->bqk"}> : () -> ()
    %cst_5 = arith.constant dense<0.000000e+00> : vector<2x8x8xf32>
    %18 = tpu.matmul %13, %15, %cst_5 {dimension_numbers = #tpu.dot_dimension_numbers<[2], [2], [1], [1], [0, 0, 0, 1, 1, 1], [0], [0]>} : vector<2x8x8xf32>, vector<2x8x8xf32>, vector<2x8x8xf32> -> vector<2x8x8xf32>
    "tpu.trace_stop"() : () -> ()
    %cst_6 = arith.constant dense<0xFF800000> : vector<2x8xf32>
    %19 = vector.multi_reduction <maximumf>, %18, %cst_6 [2] : vector<2x8x8xf32> to vector<2x8xf32>
    %20 = vector.shape_cast %19 : vector<2x8xf32> to vector<2x8x1xf32>
    %21 = vector.broadcast %20 : vector<2x8x1xf32> to vector<2x8x8xf32>
    %22 = arith.subf %18, %21 : vector<2x8x8xf32>
    %23 = math.exp %22 : vector<2x8x8xf32>
    %cst_7 = arith.constant dense<0.000000e+00> : vector<2x8xf32>
    %24 = vector.multi_reduction <add>, %23, %cst_7 [2] : vector<2x8x8xf32> to vector<2x8xf32>
    %25 = vector.shape_cast %24 : vector<2x8xf32> to vector<2x8x1xf32>
    %26 = tpu.reciprocal %25 {approx = true} : vector<2x8x1xf32> -> vector<2x8x1xf32>
    %27 = vector.broadcast %26 : vector<2x8x1xf32> to vector<2x8x8xf32>
    %28 = arith.mulf %23, %27 : vector<2x8x8xf32>
    "tpu.trace_start"() <{level = 10 : i32, message = "bqk,bkd->bqd"}> : () -> ()
    %cst_8 = arith.constant dense<0.000000e+00> : vector<2x8x8xf32>
    %29 = tpu.matmul %28, %17, %cst_8 {dimension_numbers = #tpu.dot_dimension_numbers<[2], [1], [1], [2], [0, 0, 0, 1, 1, 2], [0], [0]>} : vector<2x8x8xf32>, vector<2x8x8xf32>, vector<2x8x8xf32> -> vector<2x8x8xf32>
    "tpu.trace_stop"() : () -> ()
    %30 = vector.shape_cast %29 : vector<2x8x8xf32> to vector<16x8xf32>
    %31 = vector.extract_strided_slice %11 {offsets = [0, 0], sizes = [8, 32], strides = [1, 1]} : vector<32x32xf32> to vector<8x32xf32>
    %cst_9 = arith.constant dense<0.000000e+00> : vector<16x32xf32>
    %32 = tpu.matmul %30, %31, %cst_9 {dimension_numbers = #tpu.dot_dimension_numbers<[1], [0], [0], [1], [0, 0, 1, 1], [], []>} : vector<16x8xf32>, vector<8x32xf32>, vector<16x32xf32> -> vector<16x32xf32>
    %33 = vector.extract_strided_slice %8 {offsets = [0, 8], sizes = [16, 8], strides = [1, 1]} : vector<16x32xf32> to vector<16x8xf32>
    %34 = vector.shape_cast %33 : vector<16x8xf32> to vector<2x8x8xf32>
    %35 = vector.extract_strided_slice %9 {offsets = [0, 8], sizes = [16, 8], strides = [1, 1]} : vector<16x32xf32> to vector<16x8xf32>
    %36 = vector.shape_cast %35 : vector<16x8xf32> to vector<2x8x8xf32>
    %37 = vector.extract_strided_slice %10 {offsets = [0, 8], sizes = [16, 8], strides = [1, 1]} : vector<16x32xf32> to vector<16x8xf32>
    %38 = vector.shape_cast %37 : vector<16x8xf32> to vector<2x8x8xf32>
    "tpu.trace_start"() <{level = 10 : i32, message = "bqd,bkd->bqk"}> : () -> ()
    %cst_10 = arith.constant dense<0.000000e+00> : vector<2x8x8xf32>
    %39 = tpu.matmul %34, %36, %cst_10 {dimension_numbers = #tpu.dot_dimension_numbers<[2], [2], [1], [1], [0, 0, 0, 1, 1, 1], [0], [0]>} : vector<2x8x8xf32>, vector<2x8x8xf32>, vector<2x8x8xf32> -> vector<2x8x8xf32>
    "tpu.trace_stop"() : () -> ()
    %cst_11 = arith.constant dense<0xFF800000> : vector<2x8xf32>
    %40 = vector.multi_reduction <maximumf>, %39, %cst_11 [2] : vector<2x8x8xf32> to vector<2x8xf32>
    %41 = vector.shape_cast %40 : vector<2x8xf32> to vector<2x8x1xf32>
    %42 = vector.broadcast %41 : vector<2x8x1xf32> to vector<2x8x8xf32>
    %43 = arith.subf %39, %42 : vector<2x8x8xf32>
    %44 = math.exp %43 : vector<2x8x8xf32>
    %cst_12 = arith.constant dense<0.000000e+00> : vector<2x8xf32>
    %45 = vector.multi_reduction <add>, %44, %cst_12 [2] : vector<2x8x8xf32> to vector<2x8xf32>
    %46 = vector.shape_cast %45 : vector<2x8xf32> to vector<2x8x1xf32>
    %47 = tpu.reciprocal %46 {approx = true} : vector<2x8x1xf32> -> vector<2x8x1xf32>
    %48 = vector.broadcast %47 : vector<2x8x1xf32> to vector<2x8x8xf32>
    %49 = arith.mulf %44, %48 : vector<2x8x8xf32>
    "tpu.trace_start"() <{level = 10 : i32, message = "bqk,bkd->bqd"}> : () -> ()
    %cst_13 = arith.constant dense<0.000000e+00> : vector<2x8x8xf32>
    %50 = tpu.matmul %49, %38, %cst_13 {dimension_numbers = #tpu.dot_dimension_numbers<[2], [1], [1], [2], [0, 0, 0, 1, 1, 2], [0], [0]>} : vector<2x8x8xf32>, vector<2x8x8xf32>, vector<2x8x8xf32> -> vector<2x8x8xf32>
    "tpu.trace_stop"() : () -> ()
    %51 = vector.shape_cast %50 : vector<2x8x8xf32> to vector<16x8xf32>
    %52 = vector.extract_strided_slice %11 {offsets = [8, 0], sizes = [8, 32], strides = [1, 1]} : vector<32x32xf32> to vector<8x32xf32>
    %cst_14 = arith.constant dense<0.000000e+00> : vector<16x32xf32>
    %53 = tpu.matmul %51, %52, %cst_14 {dimension_numbers = #tpu.dot_dimension_numbers<[1], [0], [0], [1], [0, 0, 1, 1], [], []>} : vector<16x8xf32>, vector<8x32xf32>, vector<16x32xf32> -> vector<16x32xf32>
    %54 = arith.addf %32, %53 : vector<16x32xf32>
    %55 = vector.extract_strided_slice %8 {offsets = [0, 16], sizes = [16, 8], strides = [1, 1]} : vector<16x32xf32> to vector<16x8xf32>
    %56 = vector.shape_cast %55 : vector<16x8xf32> to vector<2x8x8xf32>
    %57 = vector.extract_strided_slice %9 {offsets = [0, 16], sizes = [16, 8], strides = [1, 1]} : vector<16x32xf32> to vector<16x8xf32>
    %58 = vector.shape_cast %57 : vector<16x8xf32> to vector<2x8x8xf32>
    %59 = vector.extract_strided_slice %10 {offsets = [0, 16], sizes = [16, 8], strides = [1, 1]} : vector<16x32xf32> to vector<16x8xf32>
    %60 = vector.shape_cast %59 : vector<16x8xf32> to vector<2x8x8xf32>
    "tpu.trace_start"() <{level = 10 : i32, message = "bqd,bkd->bqk"}> : () -> ()
    %cst_15 = arith.constant dense<0.000000e+00> : vector<2x8x8xf32>
    %61 = tpu.matmul %56, %58, %cst_15 {dimension_numbers = #tpu.dot_dimension_numbers<[2], [2], [1], [1], [0, 0, 0, 1, 1, 1], [0], [0]>} : vector<2x8x8xf32>, vector<2x8x8xf32>, vector<2x8x8xf32> -> vector<2x8x8xf32>
    "tpu.trace_stop"() : () -> ()
    %cst_16 = arith.constant dense<0xFF800000> : vector<2x8xf32>
    %62 = vector.multi_reduction <maximumf>, %61, %cst_16 [2] : vector<2x8x8xf32> to vector<2x8xf32>
    %63 = vector.shape_cast %62 : vector<2x8xf32> to vector<2x8x1xf32>
    %64 = vector.broadcast %63 : vector<2x8x1xf32> to vector<2x8x8xf32>
    %65 = arith.subf %61, %64 : vector<2x8x8xf32>
    %66 = math.exp %65 : vector<2x8x8xf32>
    %cst_17 = arith.constant dense<0.000000e+00> : vector<2x8xf32>
    %67 = vector.multi_reduction <add>, %66, %cst_17 [2] : vector<2x8x8xf32> to vector<2x8xf32>
    %68 = vector.shape_cast %67 : vector<2x8xf32> to vector<2x8x1xf32>
    %69 = tpu.reciprocal %68 {approx = true} : vector<2x8x1xf32> -> vector<2x8x1xf32>
    %70 = vector.broadcast %69 : vector<2x8x1xf32> to vector<2x8x8xf32>
    %71 = arith.mulf %66, %70 : vector<2x8x8xf32>
    "tpu.trace_start"() <{level = 10 : i32, message = "bqk,bkd->bqd"}> : () -> ()
    %cst_18 = arith.constant dense<0.000000e+00> : vector<2x8x8xf32>
    %72 = tpu.matmul %71, %60, %cst_18 {dimension_numbers = #tpu.dot_dimension_numbers<[2], [1], [1], [2], [0, 0, 0, 1, 1, 2], [0], [0]>} : vector<2x8x8xf32>, vector<2x8x8xf32>, vector<2x8x8xf32> -> vector<2x8x8xf32>
    "tpu.trace_stop"() : () -> ()
    %73 = vector.shape_cast %72 : vector<2x8x8xf32> to vector<16x8xf32>
    %74 = vector.extract_strided_slice %11 {offsets = [16, 0], sizes = [8, 32], strides = [1, 1]} : vector<32x32xf32> to vector<8x32xf32>
    %cst_19 = arith.constant dense<0.000000e+00> : vector<16x32xf32>
    %75 = tpu.matmul %73, %74, %cst_19 {dimension_numbers = #tpu.dot_dimension_numbers<[1], [0], [0], [1], [0, 0, 1, 1], [], []>} : vector<16x8xf32>, vector<8x32xf32>, vector<16x32xf32> -> vector<16x32xf32>
    %76 = arith.addf %54, %75 : vector<16x32xf32>
    %77 = vector.extract_strided_slice %8 {offsets = [0, 24], sizes = [16, 8], strides = [1, 1]} : vector<16x32xf32> to vector<16x8xf32>
    %78 = vector.shape_cast %77 : vector<16x8xf32> to vector<2x8x8xf32>
    %79 = vector.extract_strided_slice %9 {offsets = [0, 24], sizes = [16, 8], strides = [1, 1]} : vector<16x32xf32> to vector<16x8xf32>
    %80 = vector.shape_cast %79 : vector<16x8xf32> to vector<2x8x8xf32>
    %81 = vector.extract_strided_slice %10 {offsets = [0, 24], sizes = [16, 8], strides = [1, 1]} : vector<16x32xf32> to vector<16x8xf32>
    %82 = vector.shape_cast %81 : vector<16x8xf32> to vector<2x8x8xf32>
    "tpu.trace_start"() <{level = 10 : i32, message = "bqd,bkd->bqk"}> : () -> ()
    %cst_20 = arith.constant dense<0.000000e+00> : vector<2x8x8xf32>
    %83 = tpu.matmul %78, %80, %cst_20 {dimension_numbers = #tpu.dot_dimension_numbers<[2], [2], [1], [1], [0, 0, 0, 1, 1, 1], [0], [0]>} : vector<2x8x8xf32>, vector<2x8x8xf32>, vector<2x8x8xf32> -> vector<2x8x8xf32>
    "tpu.trace_stop"() : () -> ()
    %cst_21 = arith.constant dense<0xFF800000> : vector<2x8xf32>
    %84 = vector.multi_reduction <maximumf>, %83, %cst_21 [2] : vector<2x8x8xf32> to vector<2x8xf32>
    %85 = vector.shape_cast %84 : vector<2x8xf32> to vector<2x8x1xf32>
    %86 = vector.broadcast %85 : vector<2x8x1xf32> to vector<2x8x8xf32>
    %87 = arith.subf %83, %86 : vector<2x8x8xf32>
    %88 = math.exp %87 : vector<2x8x8xf32>
    %cst_22 = arith.constant dense<0.000000e+00> : vector<2x8xf32>
    %89 = vector.multi_reduction <add>, %88, %cst_22 [2] : vector<2x8x8xf32> to vector<2x8xf32>
    %90 = vector.shape_cast %89 : vector<2x8xf32> to vector<2x8x1xf32>
    %91 = tpu.reciprocal %90 {approx = true} : vector<2x8x1xf32> -> vector<2x8x1xf32>
    %92 = vector.broadcast %91 : vector<2x8x1xf32> to vector<2x8x8xf32>
    %93 = arith.mulf %88, %92 : vector<2x8x8xf32>
    "tpu.trace_start"() <{level = 10 : i32, message = "bqk,bkd->bqd"}> : () -> ()
    %cst_23 = arith.constant dense<0.000000e+00> : vector<2x8x8xf32>
    %94 = tpu.matmul %93, %82, %cst_23 {dimension_numbers = #tpu.dot_dimension_numbers<[2], [1], [1], [2], [0, 0, 0, 1, 1, 2], [0], [0]>} : vector<2x8x8xf32>, vector<2x8x8xf32>, vector<2x8x8xf32> -> vector<2x8x8xf32>
    "tpu.trace_stop"() : () -> ()
    %95 = vector.shape_cast %94 : vector<2x8x8xf32> to vector<16x8xf32>
    %96 = vector.extract_strided_slice %11 {offsets = [24, 0], sizes = [8, 32], strides = [1, 1]} : vector<32x32xf32> to vector<8x32xf32>
    %cst_24 = arith.constant dense<0.000000e+00> : vector<16x32xf32>
    %97 = tpu.matmul %95, %96, %cst_24 {dimension_numbers = #tpu.dot_dimension_numbers<[1], [0], [0], [1], [0, 0, 1, 1], [], []>} : vector<16x8xf32>, vector<8x32xf32>, vector<16x32xf32> -> vector<16x32xf32>
    %98 = arith.addf %76, %97 : vector<16x32xf32>
    %99 = vector.extract_strided_slice %2 {offsets = [1, 0], sizes = [1, 32], strides = [1, 1]} : vector<8x128xf32> to vector<1x32xf32>
    %100 = vector.broadcast %99 : vector<1x32xf32> to vector<16x32xf32>
    %101 = arith.addf %98, %100 : vector<16x32xf32>
    %102 = vector.extract_strided_slice %2 {offsets = [2, 0], sizes = [1, 32], strides = [1, 1]} : vector<8x128xf32> to vector<1x32xf32>
    %103 = vector.extract_strided_slice %2 {offsets = [3, 0], sizes = [1, 32], strides = [1, 1]} : vector<8x128xf32> to vector<1x32xf32>
    %cst_25 = arith.constant dense<0.000000e+00> : vector<16xf32>
    %104 = vector.multi_reduction <add>, %101, %cst_25 [1] : vector<16x32xf32> to vector<16xf32>
    %105 = vector.shape_cast %104 : vector<16xf32> to vector<16x1xf32>
    %cst_26 = arith.constant 3.200000e+01 : f32
    %106 = vector.broadcast %cst_26 : f32 to vector<16x1xf32>
    %107 = arith.divf %105, %106 : vector<16x1xf32>
    %108 = vector.broadcast %107 : vector<16x1xf32> to vector<16x32xf32>
    %109 = arith.subf %101, %108 : vector<16x32xf32>
    %110 = arith.mulf %109, %109 : vector<16x32xf32>
    %cst_27 = arith.constant dense<0.000000e+00> : vector<16xf32>
    %111 = vector.multi_reduction <add>, %110, %cst_27 [1] : vector<16x32xf32> to vector<16xf32>
    %112 = vector.shape_cast %111 : vector<16xf32> to vector<16x1xf32>
    %cst_28 = arith.constant 3.200000e+01 : f32
    %113 = vector.broadcast %cst_28 : f32 to vector<16x1xf32>
    %114 = arith.divf %112, %113 : vector<16x1xf32>
    %115 = vector.broadcast %107 : vector<16x1xf32> to vector<16x32xf32>
    %116 = arith.subf %101, %115 : vector<16x32xf32>
    %cst_29 = arith.constant 9.99999974E-6 : f32
    %117 = vector.broadcast %cst_29 : f32 to vector<16x1xf32>
    %118 = arith.addf %114, %117 : vector<16x1xf32>
    %119 = math.rsqrt %118 : vector<16x1xf32>
    %120 = vector.broadcast %119 : vector<16x1xf32> to vector<16x32xf32>
    %121 = arith.mulf %116, %120 : vector<16x32xf32>
    %122 = vector.broadcast %102 : vector<1x32xf32> to vector<16x32xf32>
    %123 = arith.mulf %121, %122 : vector<16x32xf32>
    %124 = vector.broadcast %103 : vector<1x32xf32> to vector<16x32xf32>
    %125 = arith.addf %123, %124 : vector<16x32xf32>
    %126 = vector.extract_strided_slice %1 {offsets = [0, 128], sizes = [32, 64], strides = [1, 1]} : vector<32x192xf32> to vector<32x64xf32>
    %cst_30 = arith.constant dense<0.000000e+00> : vector<16x64xf32>
    %127 = tpu.matmul %125, %126, %cst_30 {dimension_numbers = #tpu.dot_dimension_numbers<[1], [0], [0], [1], [0, 0, 1, 1], [], []>} : vector<16x32xf32>, vector<32x64xf32>, vector<16x64xf32> -> vector<16x64xf32>
    %128 = vector.extract_strided_slice %2 {offsets = [4, 0], sizes = [1, 64], strides = [1, 1]} : vector<8x128xf32> to vector<1x64xf32>
    %129 = vector.broadcast %128 : vector<1x64xf32> to vector<16x64xf32>
    %130 = arith.addf %127, %129 : vector<16x64xf32>
    %cst_31 = arith.constant 0.000000e+00 : f32
    %131 = vector.broadcast %cst_31 : f32 to vector<16x64xf32>
    %132 = arith.maximumf %130, %131 : vector<16x64xf32>
    %c0_32 = arith.constant 0 : index
    %c0_33 = arith.constant 0 : index
    %133 = vector.load %arg3[%c0_32, %c0_33] : memref<64x32xf32, #tpu.memory_space<vmem>>, vector<64x32xf32>
    %cst_34 = arith.constant dense<0.000000e+00> : vector<16x32xf32>
    %134 = tpu.matmul %132, %133, %cst_34 {dimension_numbers = #tpu.dot_dimension_numbers<[1], [0], [0], [1], [0, 0, 1, 1], [], []>} : vector<16x64xf32>, vector<64x32xf32>, vector<16x32xf32> -> vector<16x32xf32>
    %135 = vector.extract_strided_slice %2 {offsets = [5, 0], sizes = [1, 32], strides = [1, 1]} : vector<8x128xf32> to vector<1x32xf32>
    %136 = vector.broadcast %135 : vector<1x32xf32> to vector<16x32xf32>
    %137 = arith.addf %134, %136 : vector<16x32xf32>
    %138 = vector.extract_strided_slice %2 {offsets = [6, 0], sizes = [1, 32], strides = [1, 1]} : vector<8x128xf32> to vector<1x32xf32>
    %139 = vector.extract_strided_slice %2 {offsets = [7, 0], sizes = [1, 32], strides = [1, 1]} : vector<8x128xf32> to vector<1x32xf32>
    %cst_35 = arith.constant dense<0.000000e+00> : vector<16xf32>
    %140 = vector.multi_reduction <add>, %137, %cst_35 [1] : vector<16x32xf32> to vector<16xf32>
    %141 = vector.shape_cast %140 : vector<16xf32> to vector<16x1xf32>
    %cst_36 = arith.constant 3.200000e+01 : f32
    %142 = vector.broadcast %cst_36 : f32 to vector<16x1xf32>
    %143 = arith.divf %141, %142 : vector<16x1xf32>
    %144 = vector.broadcast %143 : vector<16x1xf32> to vector<16x32xf32>
    %145 = arith.subf %137, %144 : vector<16x32xf32>
    %146 = arith.mulf %145, %145 : vector<16x32xf32>
    %cst_37 = arith.constant dense<0.000000e+00> : vector<16xf32>
    %147 = vector.multi_reduction <add>, %146, %cst_37 [1] : vector<16x32xf32> to vector<16xf32>
    %148 = vector.shape_cast %147 : vector<16xf32> to vector<16x1xf32>
    %cst_38 = arith.constant 3.200000e+01 : f32
    %149 = vector.broadcast %cst_38 : f32 to vector<16x1xf32>
    %150 = arith.divf %148, %149 : vector<16x1xf32>
    %151 = vector.broadcast %143 : vector<16x1xf32> to vector<16x32xf32>
    %152 = arith.subf %137, %151 : vector<16x32xf32>
    %cst_39 = arith.constant 9.99999974E-6 : f32
    %153 = vector.broadcast %cst_39 : f32 to vector<16x1xf32>
    %154 = arith.addf %150, %153 : vector<16x1xf32>
    %155 = math.rsqrt %154 : vector<16x1xf32>
    %156 = vector.broadcast %155 : vector<16x1xf32> to vector<16x32xf32>
    %157 = arith.mulf %152, %156 : vector<16x32xf32>
    %158 = vector.broadcast %138 : vector<1x32xf32> to vector<16x32xf32>
    %159 = arith.mulf %157, %158 : vector<16x32xf32>
    %160 = vector.broadcast %139 : vector<1x32xf32> to vector<16x32xf32>
    %161 = arith.addf %159, %160 : vector<16x32xf32>
    %c0_40 = arith.constant 0 : index
    %c0_41 = arith.constant 0 : index
    %162 = vector.load %arg5[%c0_40, %c0_41] : memref<16x32xf32, #tpu.memory_space<vmem>>, vector<16x32xf32>
    tpu.vector_store %arg5[%c0_40, %c0_41], %161 {strides = array<i32>} : memref<16x32xf32, #tpu.memory_space<vmem>>, vector<16x32xf32>,
    return
  }
  func.func @transform_0(%arg0: i32) -> (i32, i32) {
    %c0_i32 = arith.constant 0 : i32
    %c0_i32_0 = arith.constant 0 : i32
    %c0_i32_1 = arith.constant 0 : i32
    return %c0_i32, %c0_i32_0 : i32, i32
  }
  func.func @transform_1(%arg0: i32) -> (i32, i32) {
    %c0_i32 = arith.constant 0 : i32
    %c0_i32_0 = arith.constant 0 : i32
    %c0_i32_1 = arith.constant 0 : i32
    return %c0_i32, %c0_i32_0 : i32, i32
  }
  func.func @transform_2(%arg0: i32) -> (i32, i32) {
    %c0_i32 = arith.constant 0 : i32
    %c0_i32_0 = arith.constant 0 : i32
    %c0_i32_1 = arith.constant 0 : i32
    return %c0_i32, %c0_i32_0 : i32, i32
  }
  func.func @transform_3(%arg0: i32) -> (i32, i32) {
    %c0_i32 = arith.constant 0 : i32
    %c0_i32_0 = arith.constant 0 : i32
    %c0_i32_1 = arith.constant 0 : i32
    return %c0_i32, %c0_i32_0 : i32, i32
  }
  func.func @transform_4(%arg0: i32) -> (i32, i32) {
    %c0_i32 = arith.constant 0 : i32
    %c0_i32_0 = arith.constant 0 : i32
    %c0_i32_1 = arith.constant 0 : i32
    return %c0_i32, %c0_i32_0 : i32, i32
  }
}

</mosaic_0001>

<llo_original>
// kernel: tpu_custom_call.1
$region0: #{tpu_custom_call.1}
  #allocation0 [shape = 'u32[]', space=smem, size = 0x4, offset = 0x4, fixed_abs, tag = 'smem constant byte address 0x4 - core index']
  #allocation1 [shape = 'u32[144,128]{1,0:T(1,128)}', space=vmem, size = 0x12000, scoped, tag = 'internal scratch']
  %s0 = inlined_call_operand.vmem [shape: f32[16,32], index: 0, kind: input, shape index: {}]
  %s1 = inlined_call_operand.vmem [shape: f32[32,192], index: 1, kind: input, shape index: {}]
  %s2 = inlined_call_operand.vmem [shape: f32[64,32], index: 2, kind: input, shape index: {}]
  %s3 = inlined_call_operand.vmem [shape: f32[8,128], index: 3, kind: input, shape index: {}]
  %s4 = inlined_call_operand.hbm [shape: f32[16,32], index: 4, kind: output, shape index: {}]
  %s5 = sld [smem:[#allocation0]]
  $region26: #{tpu_custom_call.1} parent=0
    _
  %s7 = ssub.s32 1, %s5
  %s8 = scalar_select 0, %s7, %s5
  $region1: #{tpu_custom_call.1} parent=0
    #allocation2 [shape = 'u8[8192]{0}', space=vmem, size = 0x2000, scoped, tag = 'output window, operand 0, single buffered']
    #allocation3 [shape = 's32[1]{0}', space=sflag, size = 0x4, scoped, tag = 'scoped memory for tpu_custom_call.1']
    %9 = vsyncpa [#allocation3], 0
    // Predicated region
    $region2: #{tpu_custom_call.1} parent=1 // pred_check
      _
    $region3: #{tpu_custom_call.1} parent=1 // pred_check_branch
      %11 = sbr.rel (0) target = $region5
    $region4: #{tpu_custom_call.1} parent=1 // pred_region
      _
    $region5: #{tpu_custom_call.1} parent=1 // pred_fallthru
      _
    // Predicated region
    $region6: #{tpu_custom_call.1} parent=1 // pred_check
      _
    $region7: #{tpu_custom_call.1} parent=1 // pred_check_branch
      %13 = sbr.rel (0) target = $region9
    $region8: #{tpu_custom_call.1} parent=1 // pred_region
      _
    $region9: #{tpu_custom_call.1} parent=1 // pred_fallthru
      _
    // Predicated region
    $region10: #{tpu_custom_call.1} parent=1 // pred_check
      _
    $region11: #{tpu_custom_call.1} parent=1 // pred_check_branch
      %15 = sbr.rel (0) target = $region13
    $region12: #{tpu_custom_call.1} parent=1 // pred_region
      _
    $region13: #{tpu_custom_call.1} parent=1 // pred_fallthru
      _
    // Predicated region
    $region14: #{tpu_custom_call.1} parent=1 // pred_check
      _
    $region15: #{tpu_custom_call.1} parent=1 // pred_check_branch
      %17 = sbr.rel (0) target = $region17
    $region16: #{tpu_custom_call.1} parent=1 // pred_region
      _
    $region17: #{tpu_custom_call.1} parent=1 // pred_fallthru
      _
    %v18 = vld [vmem:[%s0] sm:$0xff]
    %v19 = vld [vmem:[%s0 + $0x8] sm:$0xff]
    %v20 = vld [vmem:[%s1] sm:$0xff]
    %v21 = vld [vmem:[%s1 + $0x8] sm:$0xff]
    %v22 = vld [vmem:[%s1 + $0x10] sm:$0xff]
    %v23 = vld [vmem:[%s1 + $0x18] sm:$0xff]
    %v24 = vld [vmem:[%s1 + $0x20] sm:$0xff]
    %v25 = vld [vmem:[%s1 + $0x28] sm:$0xff]
    %v26 = vld [vmem:[%s1 + $0x30] sm:$0xff]
    %v27 = vld [vmem:[%s1 + $0x38] sm:$0xff]
    %v28 = vld [vmem:[%s3] sm:$0xff]
    %v29 = vlaneseq
    %v30 = vshrl.u32 %v29, 7
    %v31 = vsub.s32 0, %v30
    %v32 = vrot.slane %v28, %v31
    %vm33 = vcmask 261120
    %v35 = vsel %vm33, %v18, 0
    %v38 = vsel %vm33, %v19, 0
    %40 = vmatprep.subr.mxu0 0.0
    %41 = vmatpush1.msra.mxu0 0.0
    %42 = vmatprep.subr.mxu0 0.0
    %43 = vmatpush1.msra.mxu0 0.0
    %44 = vmatprep.subr.mxu0 0.0
    %45 = vmatpush1.msra.mxu0 0.0
    %46 = vmatprep.subr.mxu0 0.0
    %47 = vmatpush1.msra.mxu0 0.0
    %48 = vmatprep.subr.mxu0 0.0
    %49 = vmatpush1.msra.mxu0 0.0
    %50 = vmatprep.subr.mxu0 0.0
    %51 = vmatpush1.msra.mxu0 0.0
    %52 = vmatprep.subr.mxu0 0.0
    %53 = vmatpush1.msra.mxu0 0.0
    %54 = vmatprep.subr.mxu0 0.0
    %55 = vmatpush1.msra.mxu0 0.0
    %56 = vmatprep.subr.mxu0 0.0
    %57 = vmatpush1.msra.mxu0 0.0
    %58 = vmatprep.subr.mxu0 0.0
    %59 = vmatpush1.msra.mxu0 0.0
    %60 = vmatprep.subr.mxu0 0.0
    %61 = vmatpush1.msra.mxu0 0.0
    %62 = vmatprep.subr.mxu0 0.0
    %63 = vmatpush1.msra.mxu0 0.0
    %64 = vmatprep.subr.mxu0 0.0
    %65 = vmatpush1.msra.mxu0 %v26
    %66 = vmatprep.subr.mxu0 0.0
    %67 = vmatpush1.msra.mxu0 %v24
    %68 = vmatprep.subr.mxu0 0.0
    %69 = vmatpush1.msra.mxu0 %v22
    %70 = vmatprep.subr.mxu0 0.0
    %71 = vmatpush1.msra.mxu0 %v20
    %72 = vmatprep.subr.mxu0 0.0
    %73 = vmatpush2.msra.mxu0 0.0
    %74 = vmatprep.subr.mxu0 0.0
    %75 = vmatpush2.msra.mxu0 0.0
    %76 = vmatprep.subr.mxu0 0.0
    %77 = vmatpush2.msra.mxu0 0.0
    %78 = vmatprep.subr.mxu0 0.0
    %79 = vmatpush2.msra.mxu0 0.0
    %80 = vmatprep.subr.mxu0 0.0
    %81 = vmatpush2.msra.mxu0 0.0
    %82 = vmatprep.subr.mxu0 0.0
    %83 = vmatpush2.msra.mxu0 0.0
    %84 = vmatprep.subr.mxu0 0.0
    %85 = vmatpush2.msra.mxu0 0.0
    %86 = vmatprep.subr.mxu0 0.0
    %87 = vmatpush2.msra.mxu0 0.0
    %88 = vmatprep.subr.mxu0 0.0
    %89 = vmatpush2.msra.mxu0 0.0
    %90 = vmatprep.subr.mxu0 0.0
    %91 = vmatpush2.msra.mxu0 0.0
    %92 = vmatprep.subr.mxu0 0.0
    %93 = vmatpush2.msra.mxu0 0.0
    %94 = vmatprep.subr.mxu0 0.0
    %95 = vmatpush2.msra.mxu0 0.0
    %96 = vmatprep.subr.mxu0 0.0
    %97 = vmatpush2.msra.mxu0 0.0
    %98 = vmatprep.subr.mxu0 0.0
    %99 = vmatpush2.msra.mxu0 0.0
    %100 = vmatprep.subr.mxu0 0.0
    %101 = vmatpush2.msra.mxu0 0.0
    %102 = vmatprep.subr.mxu0 0.0
    %103 = vmatpush2.msra.mxu0 0.0
    %104 = vmatprep.mubr.f32.mxu0 0.0
    %105 = vmatmul.mubr.f32.gmra.mxu0 %v35
    %v106 = vpop.f32.mrf.mxu0
    %v107 = vadd.f32 %v32, %v106
    %v108 = vpop.f32.mrf.mxu0
    %109 = vmatprep.mubr.f32.mxu0 0.0
    %110 = vmatmul.mubr.f32.gmra.mxu0 %v38
    %v111 = vpop.f32.mrf.mxu0
    %v112 = vadd.f32 %v32, %v111
    %v113 = vpop.f32.mrf.mxu0
    %114 = vdwg.mxu0
    %116 = vrot.lane.b32.xlu0 %v107, 96
    %v117 = vpop.permute.xlu0 %116
    %vm118 = vcmask 64512
    %v119 = vsel %vm118, %v107, 0
    %v121 = vsel %vm118, %v117, 0
    %123 = vmatprep.subr.mxu0 0.0
    %124 = vmatpush1.xpose.msra.mxu0 0.0
    %125 = vmatprep.subr.mxu0 0.0
    %126 = vmatpush1.xpose.msra.mxu0 0.0
    %127 = vmatprep.subr.mxu0 0.0
    %128 = vmatpush1.xpose.msra.mxu0 0.0
    %129 = vmatprep.subr.mxu0 0.0
    %130 = vmatpush1.xpose.msra.mxu0 0.0
    %131 = vmatprep.subr.mxu0 0.0
    %132 = vmatpush1.xpose.msra.mxu0 0.0
    %133 = vmatprep.subr.mxu0 0.0
    %134 = vmatpush1.xpose.msra.mxu0 0.0
    %135 = vmatprep.subr.mxu0 0.0
    %136 = vmatpush1.xpose.msra.mxu0 0.0
    %137 = vmatprep.subr.mxu0 0.0
    %138 = vmatpush1.xpose.msra.mxu0 0.0
    %139 = vmatprep.subr.mxu0 0.0
    %140 = vmatpush1.xpose.msra.mxu0 0.0
    %141 = vmatprep.subr.mxu0 0.0
    %142 = vmatpush1.xpose.msra.mxu0 0.0
    %143 = vmatprep.subr.mxu0 0.0
    %144 = vmatpush1.xpose.msra.mxu0 0.0
    %145 = vmatprep.subr.mxu0 0.0
    %146 = vmatpush1.xpose.msra.mxu0 0.0
    %147 = vmatprep.subr.mxu0 0.0
    %148 = vmatpush1.xpose.msra.mxu0 0.0
    %149 = vmatprep.subr.mxu0 0.0
    %150 = vmatpush1.xpose.msra.mxu0 0.0
    %151 = vmatprep.subr.mxu0 0.0
    %152 = vmatpush1.xpose.msra.mxu0 0.0
    %153 = vmatprep.subr.mxu0 0.0
    %154 = vmatpush1.xpose.msra.mxu0 %v121
    %155 = vmatprep.subr.mxu0 0.0
    %156 = vmatpush2.xpose.msra.mxu0 0.0
    %157 = vmatprep.subr.mxu0 0.0
    %158 = vmatpush2.xpose.msra.mxu0 0.0
    %159 = vmatprep.subr.mxu0 0.0
    %160 = vmatpush2.xpose.msra.mxu0 0.0
    %161 = vmatprep.subr.mxu0 0.0
    %162 = vmatpush2.xpose.msra.mxu0 0.0
    %163 = vmatprep.subr.mxu0 0.0
    %164 = vmatpush2.xpose.msra.mxu0 0.0
    %165 = vmatprep.subr.mxu0 0.0
    %166 = vmatpush2.xpose.msra.mxu0 0.0
    %167 = vmatprep.subr.mxu0 0.0
    %168 = vmatpush2.xpose.msra.mxu0 0.0
    %169 = vmatprep.subr.mxu0 0.0
    %170 = vmatpush2.xpose.msra.mxu0 0.0
    %171 = vmatprep.subr.mxu0 0.0
    %172 = vmatpush2.xpose.msra.mxu0 0.0
    %173 = vmatprep.subr.mxu0 0.0
    %174 = vmatpush2.xpose.msra.mxu0 0.0
    %175 = vmatprep.subr.mxu0 0.0
    %176 = vmatpush2.xpose.msra.mxu0 0.0
    %177 = vmatprep.subr.mxu0 0.0
    %178 = vmatpush2.xpose.msra.mxu0 0.0
    %179 = vmatprep.subr.mxu0 0.0
    %180 = vmatpush2.xpose.msra.mxu0 0.0
    %181 = vmatprep.subr.mxu0 0.0
    %182 = vmatpush2.xpose.msra.mxu0 0.0
    %183 = vmatprep.subr.mxu0 0.0
    %184 = vmatpush2.xpose.msra.mxu0 0.0
    %185 = vmatprep.subr.mxu0 0.0
    %186 = vmatpush2.xpose.msra.mxu0 0.0
    %187 = vmatprep.mubr.f32.mxu0 0.0
    %188 = vmatmul.mubr.f32.gmra.mxu0 %v119
    %v189 = vpop.f32.mrf.mxu0
    %v190 = vadd.f32 0.0, %v189
    %v191 = vpop.f32.mrf.mxu0
    %192 = vdwg.mxu0
    %194 = vrot.lane.b32.xlu0 %v112, 96
    %v195 = vpop.permute.xlu0 %194
    %v196 = vsel %vm118, %v112, 0
    %v198 = vsel %vm118, %v195, 0
    %200 = vmatprep.subr.mxu0 0.0
    %201 = vmatpush1.xpose.msra.mxu0 0.0
    %202 = vmatprep.subr.mxu0 0.0
    %203 = vmatpush1.xpose.msra.mxu0 0.0
    %204 = vmatprep.subr.mxu0 0.0
    %205 = vmatpush1.xpose.msra.mxu0 0.0
    %206 = vmatprep.subr.mxu0 0.0
    %207 = vmatpush1.xpose.msra.mxu0 0.0
    %208 = vmatprep.subr.mxu0 0.0
    %209 = vmatpush1.xpose.msra.mxu0 0.0
    %210 = vmatprep.subr.mxu0 0.0
    %211 = vmatpush1.xpose.msra.mxu0 0.0
    %212 = vmatprep.subr.mxu0 0.0
    %213 = vmatpush1.xpose.msra.mxu0 0.0
    %214 = vmatprep.subr.mxu0 0.0
    %215 = vmatpush1.xpose.msra.mxu0 0.0
    %216 = vmatprep.subr.mxu0 0.0
    %217 = vmatpush1.xpose.msra.mxu0 0.0
    %218 = vmatprep.subr.mxu0 0.0
    %219 = vmatpush1.xpose.msra.mxu0 0.0
    %220 = vmatprep.subr.mxu0 0.0
    %221 = vmatpush1.xpose.msra.mxu0 0.0
    %222 = vmatprep.subr.mxu0 0.0
    %223 = vmatpush1.xpose.msra.mxu0 0.0
    %224 = vmatprep.subr.mxu0 0.0
    %225 = vmatpush1.xpose.msra.mxu0 0.0
    %226 = vmatprep.subr.mxu0 0.0
    %227 = vmatpush1.xpose.msra.mxu0 0.0
    %228 = vmatprep.subr.mxu0 0.0
    %229 = vmatpush1.xpose.msra.mxu0 0.0
    %230 = vmatprep.subr.mxu0 0.0
    %231 = vmatpush1.xpose.msra.mxu0 %v198
    %232 = vmatprep.subr.mxu0 0.0
    %233 = vmatpush2.xpose.msra.mxu0 0.0
    %234 = vmatprep.subr.mxu0 0.0
    %235 = vmatpush2.xpose.msra.mxu0 0.0
    %236 = vmatprep.subr.mxu0 0.0
    %237 = vmatpush2.xpose.msra.mxu0 0.0
    %238 = vmatprep.subr.mxu0 0.0
    %239 = vmatpush2.xpose.msra.mxu0 0.0
    %240 = vmatprep.subr.mxu0 0.0
    %241 = vmatpush2.xpose.msra.mxu0 0.0
    %242 = vmatprep.subr.mxu0 0.0
    %243 = vmatpush2.xpose.msra.mxu0 0.0
    %244 = vmatprep.subr.mxu0 0.0
    %245 = vmatpush2.xpose.msra.mxu0 0.0
    %246 = vmatprep.subr.mxu0 0.0
    %247 = vmatpush2.xpose.msra.mxu0 0.0
    %248 = vmatprep.subr.mxu0 0.0
    %249 = vmatpush2.xpose.msra.mxu0 0.0
    %250 = vmatprep.subr.mxu0 0.0
    %251 = vmatpush2.xpose.msra.mxu0 0.0
    %252 = vmatprep.subr.mxu0 0.0
    %253 = vmatpush2.xpose.msra.mxu0 0.0
    %254 = vmatprep.subr.mxu0 0.0
    %255 = vmatpush2.xpose.msra.mxu0 0.0
    %256 = vmatprep.subr.mxu0 0.0
    %257 = vmatpush2.xpose.msra.mxu0 0.0
    %258 = vmatprep.subr.mxu0 0.0
    %259 = vmatpush2.xpose.msra.mxu0 0.0
    %260 = vmatprep.subr.mxu0 0.0
    %261 = vmatpush2.xpose.msra.mxu0 0.0
    %262 = vmatprep.subr.mxu0 0.0
    %263 = vmatpush2.xpose.msra.mxu0 0.0
    %264 = vmatprep.mubr.f32.mxu0 0.0
    %265 = vmatmul.mubr.f32.gmra.mxu0 %v196
    %v266 = vpop.f32.mrf.mxu0
    %v267 = vadd.f32 0.0, %v266
    %v268 = vpop.f32.mrf.mxu0
    %269 = vdwg.mxu0
    %v270 = vsel %vm118, %v190, -inf
    %271 = vmax.xlane.f32.xlu0 %v270
    %v272 = vpop.xlane.xlu0 %271
    %v273 = vsel %vm118, %v267, -inf
    %274 = vmax.xlane.f32.xlu0 %v273
    %v275 = vpop.xlane.xlu0 %274
    %v276 = vsub.f32 %v190, %v272
    %v277 = vsub.f32 %v267, %v275
    %v278 = vmul.f32 %v276, 1.442695
    %v279 = vpow.pop %v278
    %v280 = vmul.f32 %v277, 1.442695
    %v281 = vpow.pop %v280
    %v282 = vsel %vm118, %v279, 0.0
    %283 = vadd.xlane.f32.xlu0 %v282
    %v284 = vpop.xlane.xlu0 %283
    %v285 = vsel %vm118, %v281, 0.0
    %286 = vadd.xlane.f32.xlu0 %v285
    %v287 = vpop.xlane.xlu0 %286
    %v288 = vrcp.pop %v284
    %v289 = vrcp.pop %v287
    %v290 = vmul.f32 %v279, %v288
    %v291 = vmul.f32 %v281, %v289
    %292 = vrot.lane.b32.xlu0 %v107, 64
    %v293 = vpop.permute.xlu0 %292
    %v296 = vsel %vm118, %v290, 0
    %298 = vmatprep.subr.mxu0 0.0
    %299 = vmatpush1.msra.mxu0 0.0
    %300 = vmatprep.subr.mxu0 0.0
    %301 = vmatpush1.msra.mxu0 0.0
    %302 = vmatprep.subr.mxu0 0.0
    %303 = vmatpush1.msra.mxu0 0.0
    %304 = vmatprep.subr.mxu0 0.0
    %305 = vmatpush1.msra.mxu0 0.0
    %306 = vmatprep.subr.mxu0 0.0
    %307 = vmatpush1.msra.mxu0 0.0
    %308 = vmatprep.subr.mxu0 0.0
    %309 = vmatpush1.msra.mxu0 0.0
    %310 = vmatprep.subr.mxu0 0.0
    %311 = vmatpush1.msra.mxu0 0.0
    %312 = vmatprep.subr.mxu0 0.0
    %313 = vmatpush1.msra.mxu0 0.0
    %314 = vmatprep.subr.mxu0 0.0
    %315 = vmatpush1.msra.mxu0 0.0
    %316 = vmatprep.subr.mxu0 0.0
    %317 = vmatpush1.msra.mxu0 0.0
    %318 = vmatprep.subr.mxu0 0.0
    %319 = vmatpush1.msra.mxu0 0.0
    %320 = vmatprep.subr.mxu0 0.0
    %321 = vmatpush1.msra.mxu0 0.0
    %322 = vmatprep.subr.mxu0 0.0
    %323 = vmatpush1.msra.mxu0 0.0
    %324 = vmatprep.subr.mxu0 0.0
    %325 = vmatpush1.msra.mxu0 0.0
    %326 = vmatprep.subr.mxu0 0.0
    %327 = vmatpush1.msra.mxu0 0.0
    %328 = vmatprep.subr.mxu0 0.0
    %329 = vmatpush1.msra.mxu0 %v293
    %330 = vmatprep.subr.mxu0 0.0
    %331 = vmatpush2.msra.mxu0 0.0
    %332 = vmatprep.subr.mxu0 0.0
    %333 = vmatpush2.msra.mxu0 0.0
    %334 = vmatprep.subr.mxu0 0.0
    %335 = vmatpush2.msra.mxu0 0.0
    %336 = vmatprep.subr.mxu0 0.0
    %337 = vmatpush2.msra.mxu0 0.0
    %338 = vmatprep.subr.mxu0 0.0
    %339 = vmatpush2.msra.mxu0 0.0
    %340 = vmatprep.subr.mxu0 0.0
    %341 = vmatpush2.msra.mxu0 0.0
    %342 = vmatprep.subr.mxu0 0.0
    %343 = vmatpush2.msra.mxu0 0.0
    %344 = vmatprep.subr.mxu0 0.0
    %345 = vmatpush2.msra.mxu0 0.0
    %346 = vmatprep.subr.mxu0 0.0
    %347 = vmatpush2.msra.mxu0 0.0
    %348 = vmatprep.subr.mxu0 0.0
    %349 = vmatpush2.msra.mxu0 0.0
    %350 = vmatprep.subr.mxu0 0.0
    %351 = vmatpush2.msra.mxu0 0.0
    %352 = vmatprep.subr.mxu0 0.0
    %353 = vmatpush2.msra.mxu0 0.0
    %354 = vmatprep.subr.mxu0 0.0
    %355 = vmatpush2.msra.mxu0 0.0
    %356 = vmatprep.subr.mxu0 0.0
    %357 = vmatpush2.msra.mxu0 0.0
    %358 = vmatprep.subr.mxu0 0.0
    %359 = vmatpush2.msra.mxu0 0.0
    %360 = vmatprep.subr.mxu0 0.0
    %361 = vmatpush2.msra.mxu0 0.0
    %362 = vmatprep.mubr.f32.mxu0 0.0
    %363 = vmatmul.mubr.f32.gmra.mxu0 %v296
    %v364 = vpop.f32.mrf.mxu0
    %v365 = vadd.f32 0.0, %v364
    %v366 = vpop.f32.mrf.mxu0
    %367 = vdwg.mxu0
    %368 = vrot.lane.b32.xlu0 %v112, 64
    %v369 = vpop.permute.xlu0 %368
    %v372 = vsel %vm118, %v291, 0
    %374 = vmatprep.subr.mxu0 0.0
    %375 = vmatpush1.msra.mxu0 0.0
    %376 = vmatprep.subr.mxu0 0.0
    %377 = vmatpush1.msra.mxu0 0.0
    %378 = vmatprep.subr.mxu0 0.0
    %379 = vmatpush1.msra.mxu0 0.0
    %380 = vmatprep.subr.mxu0 0.0
    %381 = vmatpush1.msra.mxu0 0.0
    %382 = vmatprep.subr.mxu0 0.0
    %383 = vmatpush1.msra.mxu0 0.0
    %384 = vmatprep.subr.mxu0 0.0
    %385 = vmatpush1.msra.mxu0 0.0
    %386 = vmatprep.subr.mxu0 0.0
    %387 = vmatpush1.msra.mxu0 0.0
    %388 = vmatprep.subr.mxu0 0.0
    %389 = vmatpush1.msra.mxu0 0.0
    %390 = vmatprep.subr.mxu0 0.0
    %391 = vmatpush1.msra.mxu0 0.0
    %392 = vmatprep.subr.mxu0 0.0
    %393 = vmatpush1.msra.mxu0 0.0
    %394 = vmatprep.subr.mxu0 0.0
    %395 = vmatpush1.msra.mxu0 0.0
    %396 = vmatprep.subr.mxu0 0.0
    %397 = vmatpush1.msra.mxu0 0.0
    %398 = vmatprep.subr.mxu0 0.0
    %399 = vmatpush1.msra.mxu0 0.0
    %400 = vmatprep.subr.mxu0 0.0
    %401 = vmatpush1.msra.mxu0 0.0
    %402 = vmatprep.subr.mxu0 0.0
    %403 = vmatpush1.msra.mxu0 0.0
    %404 = vmatprep.subr.mxu0 0.0
    %405 = vmatpush1.msra.mxu0 %v369
    %406 = vmatprep.subr.mxu0 0.0
    %407 = vmatpush2.msra.mxu0 0.0
    %408 = vmatprep.subr.mxu0 0.0
    %409 = vmatpush2.msra.mxu0 0.0
    %410 = vmatprep.subr.mxu0 0.0
    %411 = vmatpush2.msra.mxu0 0.0
    %412 = vmatprep.subr.mxu0 0.0
    %413 = vmatpush2.msra.mxu0 0.0
    %414 = vmatprep.subr.mxu0 0.0
    %415 = vmatpush2.msra.mxu0 0.0
    %416 = vmatprep.subr.mxu0 0.0
    %417 = vmatpush2.msra.mxu0 0.0
    %418 = vmatprep.subr.mxu0 0.0
    %419 = vmatpush2.msra.mxu0 0.0
    %420 = vmatprep.subr.mxu0 0.0
    %421 = vmatpush2.msra.mxu0 0.0
    %422 = vmatprep.subr.mxu0 0.0
    %423 = vmatpush2.msra.mxu0 0.0
    %424 = vmatprep.subr.mxu0 0.0
    %425 = vmatpush2.msra.mxu0 0.0
    %426 = vmatprep.subr.mxu0 0.0
    %427 = vmatpush2.msra.mxu0 0.0
    %428 = vmatprep.subr.mxu0 0.0
    %429 = vmatpush2.msra.mxu0 0.0
    %430 = vmatprep.subr.mxu0 0.0
    %431 = vmatpush2.msra.mxu0 0.0
    %432 = vmatprep.subr.mxu0 0.0
    %433 = vmatpush2.msra.mxu0 0.0
    %434 = vmatprep.subr.mxu0 0.0
    %435 = vmatpush2.msra.mxu0 0.0
    %436 = vmatprep.subr.mxu0 0.0
    %437 = vmatpush2.msra.mxu0 0.0
    %438 = vmatprep.mubr.f32.mxu0 0.0
    %439 = vmatmul.mubr.f32.gmra.mxu0 %v372
    %v440 = vpop.f32.mrf.mxu0
    %v441 = vadd.f32 0.0, %v440
    %v442 = vpop.f32.mrf.mxu0
    %443 = vdwg.mxu0
    %444 = vrot.lane.b32.xlu0 %v107, 120
    %v445 = vpop.permute.xlu0 %444
    %446 = vrot.lane.b32.xlu0 %v107, 88
    %v447 = vpop.permute.xlu0 %446
    %v448 = vsel %vm118, %v445, 0
    %v450 = vsel %vm118, %v447, 0
    %452 = vmatprep.subr.mxu0 0.0
    %453 = vmatpush1.xpose.msra.mxu0 0.0
    %454 = vmatprep.subr.mxu0 0.0
    %455 = vmatpush1.xpose.msra.mxu0 0.0
    %456 = vmatprep.subr.mxu0 0.0
    %457 = vmatpush1.xpose.msra.mxu0 0.0
    %458 = vmatprep.subr.mxu0 0.0
    %459 = vmatpush1.xpose.msra.mxu0 0.0
    %460 = vmatprep.subr.mxu0 0.0
    %461 = vmatpush1.xpose.msra.mxu0 0.0
    %462 = vmatprep.subr.mxu0 0.0
    %463 = vmatpush1.xpose.msra.mxu0 0.0
    %464 = vmatprep.subr.mxu0 0.0
    %465 = vmatpush1.xpose.msra.mxu0 0.0
    %466 = vmatprep.subr.mxu0 0.0
    %467 = vmatpush1.xpose.msra.mxu0 0.0
    %468 = vmatprep.subr.mxu0 0.0
    %469 = vmatpush1.xpose.msra.mxu0 0.0
    %470 = vmatprep.subr.mxu0 0.0
    %471 = vmatpush1.xpose.msra.mxu0 0.0
    %472 = vmatprep.subr.mxu0 0.0
    %473 = vmatpush1.xpose.msra.mxu0 0.0
    %474 = vmatprep.subr.mxu0 0.0
    %475 = vmatpush1.xpose.msra.mxu0 0.0
    %476 = vmatprep.subr.mxu0 0.0
    %477 = vmatpush1.xpose.msra.mxu0 0.0
    %478 = vmatprep.subr.mxu0 0.0
    %479 = vmatpush1.xpose.msra.mxu0 0.0
    %480 = vmatprep.subr.mxu0 0.0
    %481 = vmatpush1.xpose.msra.mxu0 0.0
    %482 = vmatprep.subr.mxu0 0.0
    %483 = vmatpush1.xpose.msra.mxu0 %v450
    %484 = vmatprep.subr.mxu0 0.0
    %485 = vmatpush2.xpose.msra.mxu0 0.0
    %486 = vmatprep.subr.mxu0 0.0
    %487 = vmatpush2.xpose.msra.mxu0 0.0
    %488 = vmatprep.subr.mxu0 0.0
    %489 = vmatpush2.xpose.msra.mxu0 0.0
    %490 = vmatprep.subr.mxu0 0.0
    %491 = vmatpush2.xpose.msra.mxu0 0.0
    %492 = vmatprep.subr.mxu0 0.0
    %493 = vmatpush2.xpose.msra.mxu0 0.0
    %494 = vmatprep.subr.mxu0 0.0
    %495 = vmatpush2.xpose.msra.mxu0 0.0
    %496 = vmatprep.subr.mxu0 0.0
    %497 = vmatpush2.xpose.msra.mxu0 0.0
    %498 = vmatprep.subr.mxu0 0.0
    %499 = vmatpush2.xpose.msra.mxu0 0.0
    %500 = vmatprep.subr.mxu0 0.0
    %501 = vmatpush2.xpose.msra.mxu0 0.0
    %502 = vmatprep.subr.mxu0 0.0
    %503 = vmatpush2.xpose.msra.mxu0 0.0
    %504 = vmatprep.subr.mxu0 0.0
    %505 = vmatpush2.xpose.msra.mxu0 0.0
    %506 = vmatprep.subr.mxu0 0.0
    %507 = vmatpush2.xpose.msra.mxu0 0.0
    %508 = vmatprep.subr.mxu0 0.0
    %509 = vmatpush2.xpose.msra.mxu0 0.0
    %510 = vmatprep.subr.mxu0 0.0
    %511 = vmatpush2.xpose.msra.mxu0 0.0
    %512 = vmatprep.subr.mxu0 0.0
    %513 = vmatpush2.xpose.msra.mxu0 0.0
    %514 = vmatprep.subr.mxu0 0.0
    %515 = vmatpush2.xpose.msra.mxu0 0.0
    %516 = vmatprep.mubr.f32.mxu0 0.0
    %517 = vmatmul.mubr.f32.gmra.mxu0 %v448
    %v518 = vpop.f32.mrf.mxu0
    %v519 = vadd.f32 0.0, %v518
    %v520 = vpop.f32.mrf.mxu0
    %521 = vdwg.mxu0
    %522 = vrot.lane.b32.xlu0 %v112, 120
    %v523 = vpop.permute.xlu0 %522
    %524 = vrot.lane.b32.xlu0 %v112, 88
    %v525 = vpop.permute.xlu0 %524
    %v526 = vsel %vm118, %v523, 0
    %v528 = vsel %vm118, %v525, 0
    %530 = vmatprep.subr.mxu0 0.0
    %531 = vmatpush1.xpose.msra.mxu0 0.0
    %532 = vmatprep.subr.mxu0 0.0
    %533 = vmatpush1.xpose.msra.mxu0 0.0
    %534 = vmatprep.subr.mxu0 0.0
    %535 = vmatpush1.xpose.msra.mxu0 0.0
    %536 = vmatprep.subr.mxu0 0.0
    %537 = vmatpush1.xpose.msra.mxu0 0.0
    %538 = vmatprep.subr.mxu0 0.0
    %539 = vmatpush1.xpose.msra.mxu0 0.0
    %540 = vmatprep.subr.mxu0 0.0
    %541 = vmatpush1.xpose.msra.mxu0 0.0
    %542 = vmatprep.subr.mxu0 0.0
    %543 = vmatpush1.xpose.msra.mxu0 0.0
    %544 = vmatprep.subr.mxu0 0.0
    %545 = vmatpush1.xpose.msra.mxu0 0.0
    %546 = vmatprep.subr.mxu0 0.0
    %547 = vmatpush1.xpose.msra.mxu0 0.0
    %548 = vmatprep.subr.mxu0 0.0
    %549 = vmatpush1.xpose.msra.mxu0 0.0
    %550 = vmatprep.subr.mxu0 0.0
    %551 = vmatpush1.xpose.msra.mxu0 0.0
    %552 = vmatprep.subr.mxu0 0.0
    %553 = vmatpush1.xpose.msra.mxu0 0.0
    %554 = vmatprep.subr.mxu0 0.0
    %555 = vmatpush1.xpose.msra.mxu0 0.0
    %556 = vmatprep.subr.mxu0 0.0
    %557 = vmatpush1.xpose.msra.mxu0 0.0
    %558 = vmatprep.subr.mxu0 0.0
    %559 = vmatpush1.xpose.msra.mxu0 0.0
    %560 = vmatprep.subr.mxu0 0.0
    %561 = vmatpush1.xpose.msra.mxu0 %v528
    %562 = vmatprep.subr.mxu0 0.0
    %563 = vmatpush2.xpose.msra.mxu0 0.0
    %564 = vmatprep.subr.mxu0 0.0
    %565 = vmatpush2.xpose.msra.mxu0 0.0
    %566 = vmatprep.subr.mxu0 0.0
    %567 = vmatpush2.xpose.msra.mxu0 0.0
    %568 = vmatprep.subr.mxu0 0.0
    %569 = vmatpush2.xpose.msra.mxu0 0.0
    %570 = vmatprep.subr.mxu0 0.0
    %571 = vmatpush2.xpose.msra.mxu0 0.0
    %572 = vmatprep.subr.mxu0 0.0
    %573 = vmatpush2.xpose.msra.mxu0 0.0
    %574 = vmatprep.subr.mxu0 0.0
    %575 = vmatpush2.xpose.msra.mxu0 0.0
    %576 = vmatprep.subr.mxu0 0.0
    %577 = vmatpush2.xpose.msra.mxu0 0.0
    %578 = vmatprep.subr.mxu0 0.0
    %579 = vmatpush2.xpose.msra.mxu0 0.0
    %580 = vmatprep.subr.mxu0 0.0
    %581 = vmatpush2.xpose.msra.mxu0 0.0
    %582 = vmatprep.subr.mxu0 0.0
    %583 = vmatpush2.xpose.msra.mxu0 0.0
    %584 = vmatprep.subr.mxu0 0.0
    %585 = vmatpush2.xpose.msra.mxu0 0.0
    %586 = vmatprep.subr.mxu0 0.0
    %587 = vmatpush2.xpose.msra.mxu0 0.0
    %588 = vmatprep.subr.mxu0 0.0
    %589 = vmatpush2.xpose.msra.mxu0 0.0
    %590 = vmatprep.subr.mxu0 0.0
    %591 = vmatpush2.xpose.msra.mxu0 0.0
    %592 = vmatprep.subr.mxu0 0.0
    %593 = vmatpush2.xpose.msra.mxu0 0.0
    %594 = vmatprep.mubr.f32.mxu0 0.0
    %595 = vmatmul.mubr.f32.gmra.mxu0 %v526
    %v596 = vpop.f32.mrf.mxu0
    %v597 = vadd.f32 0.0, %v596
    %v598 = vpop.f32.mrf.mxu0
    %599 = vdwg.mxu0
    %v600 = vsel %vm118, %v519, -inf
    %601 = vmax.xlane.f32.xlu0 %v600
    %v602 = vpop.xlane.xlu0 %601
    %v603 = vsel %vm118, %v597, -inf
    %604 = vmax.xlane.f32.xlu0 %v603
    %v605 = vpop.xlane.xlu0 %604
    %v606 = vsub.f32 %v519, %v602
    %v607 = vsub.f32 %v597, %v605
    %v608 = vmul.f32 %v606, 1.442695
    %v609 = vpow.pop %v608
    %v610 = vmul.f32 %v607, 1.442695
    %v611 = vpow.pop %v610
    %v612 = vsel %vm118, %v609, 0.0
    %613 = vadd.xlane.f32.xlu0 %v612
    %v614 = vpop.xlane.xlu0 %613
    %v615 = vsel %vm118, %v611, 0.0
    %616 = vadd.xlane.f32.xlu0 %v615
    %v617 = vpop.xlane.xlu0 %616
    %v618 = vrcp.pop %v614
    %v619 = vrcp.pop %v617
    %v620 = vmul.f32 %v609, %v618
    %v621 = vmul.f32 %v611, %v619
    %622 = vrot.lane.b32.xlu0 %v107, 56
    %v623 = vpop.permute.xlu0 %622
    %v626 = vsel %vm118, %v620, 0
    %628 = vmatprep.subr.mxu0 0.0
    %629 = vmatpush1.msra.mxu0 0.0
    %630 = vmatprep.subr.mxu0 0.0
    %631 = vmatpush1.msra.mxu0 0.0
    %632 = vmatprep.subr.mxu0 0.0
    %633 = vmatpush1.msra.mxu0 0.0
    %634 = vmatprep.subr.mxu0 0.0
    %635 = vmatpush1.msra.mxu0 0.0
    %636 = vmatprep.subr.mxu0 0.0
    %637 = vmatpush1.msra.mxu0 0.0
    %638 = vmatprep.subr.mxu0 0.0
    %639 = vmatpush1.msra.mxu0 0.0
    %640 = vmatprep.subr.mxu0 0.0
    %641 = vmatpush1.msra.mxu0 0.0
    %642 = vmatprep.subr.mxu0 0.0
    %643 = vmatpush1.msra.mxu0 0.0
    %644 = vmatprep.subr.mxu0 0.0
    %645 = vmatpush1.msra.mxu0 0.0
    %646 = vmatprep.subr.mxu0 0.0
    %647 = vmatpush1.msra.mxu0 0.0
    %648 = vmatprep.subr.mxu0 0.0
    %649 = vmatpush1.msra.mxu0 0.0
    %650 = vmatprep.subr.mxu0 0.0
    %651 = vmatpush1.msra.mxu0 0.0
    %652 = vmatprep.subr.mxu0 0.0
    %653 = vmatpush1.msra.mxu0 0.0
    %654 = vmatprep.subr.mxu0 0.0
    %655 = vmatpush1.msra.mxu0 0.0
    %656 = vmatprep.subr.mxu0 0.0
    %657 = vmatpush1.msra.mxu0 0.0
    %658 = vmatprep.subr.mxu0 0.0
    %659 = vmatpush1.msra.mxu0 %v623
    %660 = vmatprep.subr.mxu0 0.0
    %661 = vmatpush2.msra.mxu0 0.0
    %662 = vmatprep.subr.mxu0 0.0
    %663 = vmatpush2.msra.mxu0 0.0
    %664 = vmatprep.subr.mxu0 0.0
    %665 = vmatpush2.msra.mxu0 0.0
    %666 = vmatprep.subr.mxu0 0.0
    %667 = vmatpush2.msra.mxu0 0.0
    %668 = vmatprep.subr.mxu0 0.0
    %669 = vmatpush2.msra.mxu0 0.0
    %670 = vmatprep.subr.mxu0 0.0
    %671 = vmatpush2.msra.mxu0 0.0
    %672 = vmatprep.subr.mxu0 0.0
    %673 = vmatpush2.msra.mxu0 0.0
    %674 = vmatprep.subr.mxu0 0.0
    %675 = vmatpush2.msra.mxu0 0.0
    %676 = vmatprep.subr.mxu0 0.0
    %677 = vmatpush2.msra.mxu0 0.0
    %678 = vmatprep.subr.mxu0 0.0
    %679 = vmatpush2.msra.mxu0 0.0
    %680 = vmatprep.subr.mxu0 0.0
    %681 = vmatpush2.msra.mxu0 0.0
    %682 = vmatprep.subr.mxu0 0.0
    %683 = vmatpush2.msra.mxu0 0.0
    %684 = vmatprep.subr.mxu0 0.0
    %685 = vmatpush2.msra.mxu0 0.0
    %686 = vmatprep.subr.mxu0 0.0
    %687 = vmatpush2.msra.mxu0 0.0
    %688 = vmatprep.subr.mxu0 0.0
    %689 = vmatpush2.msra.mxu0 0.0
    %690 = vmatprep.subr.mxu0 0.0
    %691 = vmatpush2.msra.mxu0 0.0
    %692 = vmatprep.mubr.f32.mxu0 0.0
    %693 = vmatmul.mubr.f32.gmra.mxu0 %v626
    %v694 = vpop.f32.mrf.mxu0
    %v695 = vadd.f32 0.0, %v694
    %v696 = vpop.f32.mrf.mxu0
    %697 = vdwg.mxu0
    %698 = vrot.lane.b32.xlu0 %v112, 56
    %v699 = vpop.permute.xlu0 %698
    %v702 = vsel %vm118, %v621, 0
    %704 = vmatprep.subr.mxu0 0.0
    %705 = vmatpush1.msra.mxu0 0.0
    %706 = vmatprep.subr.mxu0 0.0
    %707 = vmatpush1.msra.mxu0 0.0
    %708 = vmatprep.subr.mxu0 0.0
    %709 = vmatpush1.msra.mxu0 0.0
    %710 = vmatprep.subr.mxu0 0.0
    %711 = vmatpush1.msra.mxu0 0.0
    %712 = vmatprep.subr.mxu0 0.0
    %713 = vmatpush1.msra.mxu0 0.0
    %714 = vmatprep.subr.mxu0 0.0
    %715 = vmatpush1.msra.mxu0 0.0
    %716 = vmatprep.subr.mxu0 0.0
    %717 = vmatpush1.msra.mxu0 0.0
    %718 = vmatprep.subr.mxu0 0.0
    %719 = vmatpush1.msra.mxu0 0.0
    %720 = vmatprep.subr.mxu0 0.0
    %721 = vmatpush1.msra.mxu0 0.0
    %722 = vmatprep.subr.mxu0 0.0
    %723 = vmatpush1.msra.mxu0 0.0
    %724 = vmatprep.subr.mxu0 0.0
    %725 = vmatpush1.msra.mxu0 0.0
    %726 = vmatprep.subr.mxu0 0.0
    %727 = vmatpush1.msra.mxu0 0.0
    %728 = vmatprep.subr.mxu0 0.0
    %729 = vmatpush1.msra.mxu0 0.0
    %730 = vmatprep.subr.mxu0 0.0
    %731 = vmatpush1.msra.mxu0 0.0
    %732 = vmatprep.subr.mxu0 0.0
    %733 = vmatpush1.msra.mxu0 0.0
    %734 = vmatprep.subr.mxu0 0.0
    %735 = vmatpush1.msra.mxu0 %v699
    %736 = vmatprep.subr.mxu0 0.0
    %737 = vmatpush2.msra.mxu0 0.0
    %738 = vmatprep.subr.mxu0 0.0
    %739 = vmatpush2.msra.mxu0 0.0
    %740 = vmatprep.subr.mxu0 0.0
    %741 = vmatpush2.msra.mxu0 0.0
    %742 = vmatprep.subr.mxu0 0.0
    %743 = vmatpush2.msra.mxu0 0.0
    %744 = vmatprep.subr.mxu0 0.0
    %745 = vmatpush2.msra.mxu0 0.0
    %746 = vmatprep.subr.mxu0 0.0
    %747 = vmatpush2.msra.mxu0 0.0
    %748 = vmatprep.subr.mxu0 0.0
    %749 = vmatpush2.msra.mxu0 0.0
    %750 = vmatprep.subr.mxu0 0.0
    %751 = vmatpush2.msra.mxu0 0.0
    %752 = vmatprep.subr.mxu0 0.0
    %753 = vmatpush2.msra.mxu0 0.0
    %754 = vmatprep.subr.mxu0 0.0
    %755 = vmatpush2.msra.mxu0 0.0
    %756 = vmatprep.subr.mxu0 0.0
    %757 = vmatpush2.msra.mxu0 0.0
    %758 = vmatprep.subr.mxu0 0.0
    %759 = vmatpush2.msra.mxu0 0.0
    %760 = vmatprep.subr.mxu0 0.0
    %761 = vmatpush2.msra.mxu0 0.0
    %762 = vmatprep.subr.mxu0 0.0
    %763 = vmatpush2.msra.mxu0 0.0
    %764 = vmatprep.subr.mxu0 0.0
    %765 = vmatpush2.msra.mxu0 0.0
    %766 = vmatprep.subr.mxu0 0.0
    %767 = vmatpush2.msra.mxu0 0.0
    %768 = vmatprep.mubr.f32.mxu0 0.0
    %769 = vmatmul.mubr.f32.gmra.mxu0 %v702
    %v770 = vpop.f32.mrf.mxu0
    %v771 = vadd.f32 0.0, %v770
    %v772 = vpop.f32.mrf.mxu0
    %773 = vdwg.mxu0
    %775 = vrot.lane.b32.xlu0 %v22, 32
    %v776 = vpop.permute.xlu0 %775
    %v779 = vsel %vm118, %v695, 0
    %v782 = vsel %vm118, %v771, 0
    %784 = vmatprep.subr.mxu0 0.0
    %785 = vmatpush1.msra.mxu0 0.0
    %786 = vmatprep.subr.mxu0 0.0
    %787 = vmatpush1.msra.mxu0 0.0
    %788 = vmatprep.subr.mxu0 0.0
    %789 = vmatpush1.msra.mxu0 0.0
    %790 = vmatprep.subr.mxu0 0.0
    %791 = vmatpush1.msra.mxu0 0.0
    %792 = vmatprep.subr.mxu0 0.0
    %793 = vmatpush1.msra.mxu0 0.0
    %794 = vmatprep.subr.mxu0 0.0
    %795 = vmatpush1.msra.mxu0 0.0
    %796 = vmatprep.subr.mxu0 0.0
    %797 = vmatpush1.msra.mxu0 0.0
    %798 = vmatprep.subr.mxu0 0.0
    %799 = vmatpush1.msra.mxu0 0.0
    %800 = vmatprep.subr.mxu0 0.0
    %801 = vmatpush1.msra.mxu0 0.0
    %802 = vmatprep.subr.mxu0 0.0
    %803 = vmatpush1.msra.mxu0 0.0
    %804 = vmatprep.subr.mxu0 0.0
    %805 = vmatpush1.msra.mxu0 0.0
    %806 = vmatprep.subr.mxu0 0.0
    %807 = vmatpush1.msra.mxu0 0.0
    %808 = vmatprep.subr.mxu0 0.0
    %809 = vmatpush1.msra.mxu0 0.0
    %810 = vmatprep.subr.mxu0 0.0
    %811 = vmatpush1.msra.mxu0 0.0
    %812 = vmatprep.subr.mxu0 0.0
    %813 = vmatpush1.msra.mxu0 0.0
    %814 = vmatprep.subr.mxu0 0.0
    %815 = vmatpush1.msra.mxu0 %v776
    %816 = vmatprep.subr.mxu0 0.0
    %817 = vmatpush2.msra.mxu0 0.0
    %818 = vmatprep.subr.mxu0 0.0
    %819 = vmatpush2.msra.mxu0 0.0
    %820 = vmatprep.subr.mxu0 0.0
    %821 = vmatpush2.msra.mxu0 0.0
    %822 = vmatprep.subr.mxu0 0.0
    %823 = vmatpush2.msra.mxu0 0.0
    %824 = vmatprep.subr.mxu0 0.0
    %825 = vmatpush2.msra.mxu0 0.0
    %826 = vmatprep.subr.mxu0 0.0
    %827 = vmatpush2.msra.mxu0 0.0
    %828 = vmatprep.subr.mxu0 0.0
    %829 = vmatpush2.msra.mxu0 0.0
    %830 = vmatprep.subr.mxu0 0.0
    %831 = vmatpush2.msra.mxu0 0.0
    %832 = vmatprep.subr.mxu0 0.0
    %833 = vmatpush2.msra.mxu0 0.0
    %834 = vmatprep.subr.mxu0 0.0
    %835 = vmatpush2.msra.mxu0 0.0
    %836 = vmatprep.subr.mxu0 0.0
    %837 = vmatpush2.msra.mxu0 0.0
    %838 = vmatprep.subr.mxu0 0.0
    %839 = vmatpush2.msra.mxu0 0.0
    %840 = vmatprep.subr.mxu0 0.0
    %841 = vmatpush2.msra.mxu0 0.0
    %842 = vmatprep.subr.mxu0 0.0
    %843 = vmatpush2.msra.mxu0 0.0
    %844 = vmatprep.subr.mxu0 0.0
    %845 = vmatpush2.msra.mxu0 0.0
    %846 = vmatprep.subr.mxu0 0.0
    %847 = vmatpush2.msra.mxu0 0.0
    %848 = vmatprep.mubr.f32.mxu0 0.0
    %849 = vmatmul.mubr.f32.gmra.mxu0 %v779
    %v850 = vpop.f32.mrf.mxu0
    %v851 = vadd.f32 0.0, %v850
    %v852 = vpop.f32.mrf.mxu0
    %853 = vmatprep.mubr.f32.mxu0 0.0
    %854 = vmatmul.mubr.f32.gmra.mxu0 %v782
    %v855 = vpop.f32.mrf.mxu0
    %v856 = vadd.f32 0.0, %v855
    %v857 = vpop.f32.mrf.mxu0
    %858 = vdwg.mxu0
    %860 = vrot.lane.b32.xlu0 %v20, 32
    %v861 = vpop.permute.xlu0 %860
    %v864 = vsel %vm118, %v365, 0
    %v867 = vsel %vm118, %v441, 0
    %869 = vmatprep.subr.mxu0 0.0
    %870 = vmatpush1.msra.mxu0 0.0
    %871 = vmatprep.subr.mxu0 0.0
    %872 = vmatpush1.msra.mxu0 0.0
    %873 = vmatprep.subr.mxu0 0.0
    %874 = vmatpush1.msra.mxu0 0.0
    %875 = vmatprep.subr.mxu0 0.0
    %876 = vmatpush1.msra.mxu0 0.0
    %877 = vmatprep.subr.mxu0 0.0
    %878 = vmatpush1.msra.mxu0 0.0
    %879 = vmatprep.subr.mxu0 0.0
    %880 = vmatpush1.msra.mxu0 0.0
    %881 = vmatprep.subr.mxu0 0.0
    %882 = vmatpush1.msra.mxu0 0.0
    %883 = vmatprep.subr.mxu0 0.0
    %884 = vmatpush1.msra.mxu0 0.0
    %885 = vmatprep.subr.mxu0 0.0
    %886 = vmatpush1.msra.mxu0 0.0
    %887 = vmatprep.subr.mxu0 0.0
    %888 = vmatpush1.msra.mxu0 0.0
    %889 = vmatprep.subr.mxu0 0.0
    %890 = vmatpush1.msra.mxu0 0.0
    %891 = vmatprep.subr.mxu0 0.0
    %892 = vmatpush1.msra.mxu0 0.0
    %893 = vmatprep.subr.mxu0 0.0
    %894 = vmatpush1.msra.mxu0 0.0
    %895 = vmatprep.subr.mxu0 0.0
    %896 = vmatpush1.msra.mxu0 0.0
    %897 = vmatprep.subr.mxu0 0.0
    %898 = vmatpush1.msra.mxu0 0.0
    %899 = vmatprep.subr.mxu0 0.0
    %900 = vmatpush1.msra.mxu0 %v861
    %901 = vmatprep.subr.mxu0 0.0
    %902 = vmatpush2.msra.mxu0 0.0
    %903 = vmatprep.subr.mxu0 0.0
    %904 = vmatpush2.msra.mxu0 0.0
    %905 = vmatprep.subr.mxu0 0.0
    %906 = vmatpush2.msra.mxu0 0.0
    %907 = vmatprep.subr.mxu0 0.0
    %908 = vmatpush2.msra.mxu0 0.0
    %909 = vmatprep.subr.mxu0 0.0
    %910 = vmatpush2.msra.mxu0 0.0
    %911 = vmatprep.subr.mxu0 0.0
    %912 = vmatpush2.msra.mxu0 0.0
    %913 = vmatprep.subr.mxu0 0.0
    %914 = vmatpush2.msra.mxu0 0.0
    %915 = vmatprep.subr.mxu0 0.0
    %916 = vmatpush2.msra.mxu0 0.0
    %917 = vmatprep.subr.mxu0 0.0
    %918 = vmatpush2.msra.mxu0 0.0
    %919 = vmatprep.subr.mxu0 0.0
    %920 = vmatpush2.msra.mxu0 0.0
    %921 = vmatprep.subr.mxu0 0.0
    %922 = vmatpush2.msra.mxu0 0.0
    %923 = vmatprep.subr.mxu0 0.0
    %924 = vmatpush2.msra.mxu0 0.0
    %925 = vmatprep.subr.mxu0 0.0
    %926 = vmatpush2.msra.mxu0 0.0
    %927 = vmatprep.subr.mxu0 0.0
    %928 = vmatpush2.msra.mxu0 0.0
    %929 = vmatprep.subr.mxu0 0.0
    %930 = vmatpush2.msra.mxu0 0.0
    %931 = vmatprep.subr.mxu0 0.0
    %932 = vmatpush2.msra.mxu0 0.0
    %933 = vmatprep.mubr.f32.mxu0 0.0
    %934 = vmatmul.mubr.f32.gmra.mxu0 %v864
    %v935 = vpop.f32.mrf.mxu0
    %v936 = vadd.f32 %v851, %v935
    %v937 = vpop.f32.mrf.mxu0
    %938 = vmatprep.mubr.f32.mxu0 0.0
    %939 = vmatmul.mubr.f32.gmra.mxu0 %v867
    %v940 = vpop.f32.mrf.mxu0
    %v941 = vadd.f32 %v856, %v940
    %v942 = vpop.f32.mrf.mxu0
    %943 = vdwg.mxu0
    %944 = vrot.lane.b32.xlu0 %v107, 112
    %v945 = vpop.permute.xlu0 %944
    %946 = vrot.lane.b32.xlu0 %v107, 80
    %v947 = vpop.permute.xlu0 %946
    %v948 = vsel %vm118, %v945, 0
    %v950 = vsel %vm118, %v947, 0
    %952 = vmatprep.subr.mxu0 0.0
    %953 = vmatpush1.xpose.msra.mxu0 0.0
    %954 = vmatprep.subr.mxu0 0.0
    %955 = vmatpush1.xpose.msra.mxu0 0.0
    %956 = vmatprep.subr.mxu0 0.0
    %957 = vmatpush1.xpose.msra.mxu0 0.0
    %958 = vmatprep.subr.mxu0 0.0
    %959 = vmatpush1.xpose.msra.mxu0 0.0
    %960 = vmatprep.subr.mxu0 0.0
    %961 = vmatpush1.xpose.msra.mxu0 0.0
    %962 = vmatprep.subr.mxu0 0.0
    %963 = vmatpush1.xpose.msra.mxu0 0.0
    %964 = vmatprep.subr.mxu0 0.0
    %965 = vmatpush1.xpose.msra.mxu0 0.0
    %966 = vmatprep.subr.mxu0 0.0
    %967 = vmatpush1.xpose.msra.mxu0 0.0
    %968 = vmatprep.subr.mxu0 0.0
    %969 = vmatpush1.xpose.msra.mxu0 0.0
    %970 = vmatprep.subr.mxu0 0.0
    %971 = vmatpush1.xpose.msra.mxu0 0.0
    %972 = vmatprep.subr.mxu0 0.0
    %973 = vmatpush1.xpose.msra.mxu0 0.0
    %974 = vmatprep.subr.mxu0 0.0
    %975 = vmatpush1.xpose.msra.mxu0 0.0
    %976 = vmatprep.subr.mxu0 0.0
    %977 = vmatpush1.xpose.msra.mxu0 0.0
    %978 = vmatprep.subr.mxu0 0.0
    %979 = vmatpush1.xpose.msra.mxu0 0.0
    %980 = vmatprep.subr.mxu0 0.0
    %981 = vmatpush1.xpose.msra.mxu0 0.0
    %982 = vmatprep.subr.mxu0 0.0
    %983 = vmatpush1.xpose.msra.mxu0 %v950
    %984 = vmatprep.subr.mxu0 0.0
    %985 = vmatpush2.xpose.msra.mxu0 0.0
    %986 = vmatprep.subr.mxu0 0.0
    %987 = vmatpush2.xpose.msra.mxu0 0.0
    %988 = vmatprep.subr.mxu0 0.0
    %989 = vmatpush2.xpose.msra.mxu0 0.0
    %990 = vmatprep.subr.mxu0 0.0
    %991 = vmatpush2.xpose.msra.mxu0 0.0
    %992 = vmatprep.subr.mxu0 0.0
    %993 = vmatpush2.xpose.msra.mxu0 0.0
    %994 = vmatprep.subr.mxu0 0.0
    %995 = vmatpush2.xpose.msra.mxu0 0.0
    %996 = vmatprep.subr.mxu0 0.0
    %997 = vmatpush2.xpose.msra.mxu0 0.0
    %998 = vmatprep.subr.mxu0 0.0
    %999 = vmatpush2.xpose.msra.mxu0 0.0
    %1000 = vmatprep.subr.mxu0 0.0
    %1001 = vmatpush2.xpose.msra.mxu0 0.0
    %1002 = vmatprep.subr.mxu0 0.0
    %1003 = vmatpush2.xpose.msra.mxu0 0.0
    %1004 = vmatprep.subr.mxu0 0.0
    %1005 = vmatpush2.xpose.msra.mxu0 0.0
    %1006 = vmatprep.subr.mxu0 0.0
    %1007 = vmatpush2.xpose.msra.mxu0 0.0
    %1008 = vmatprep.subr.mxu0 0.0
    %1009 = vmatpush2.xpose.msra.mxu0 0.0
    %1010 = vmatprep.subr.mxu0 0.0
    %1011 = vmatpush2.xpose.msra.mxu0 0.0
    %1012 = vmatprep.subr.mxu0 0.0
    %1013 = vmatpush2.xpose.msra.mxu0 0.0
    %1014 = vmatprep.subr.mxu0 0.0
    %1015 = vmatpush2.xpose.msra.mxu0 0.0
    %1016 = vmatprep.mubr.f32.mxu0 0.0
    %1017 = vmatmul.mubr.f32.gmra.mxu0 %v948
    %v1018 = vpop.f32.mrf.mxu0
    %v1019 = vadd.f32 0.0, %v1018
    %v1020 = vpop.f32.mrf.mxu0
    %1021 = vdwg.mxu0
    %1022 = vrot.lane.b32.xlu0 %v112, 112
    %v1023 = vpop.permute.xlu0 %1022
    %1024 = vrot.lane.b32.xlu0 %v112, 80
    %v1025 = vpop.permute.xlu0 %1024
    %v1026 = vsel %vm118, %v1023, 0
    %v1028 = vsel %vm118, %v1025, 0
    %1030 = vmatprep.subr.mxu0 0.0
    %1031 = vmatpush1.xpose.msra.mxu0 0.0
    %1032 = vmatprep.subr.mxu0 0.0
    %1033 = vmatpush1.xpose.msra.mxu0 0.0
    %1034 = vmatprep.subr.mxu0 0.0
    %1035 = vmatpush1.xpose.msra.mxu0 0.0
    %1036 = vmatprep.subr.mxu0 0.0
    %1037 = vmatpush1.xpose.msra.mxu0 0.0
    %1038 = vmatprep.subr.mxu0 0.0
    %1039 = vmatpush1.xpose.msra.mxu0 0.0
    %1040 = vmatprep.subr.mxu0 0.0
    %1041 = vmatpush1.xpose.msra.mxu0 0.0
    %1042 = vmatprep.subr.mxu0 0.0
    %1043 = vmatpush1.xpose.msra.mxu0 0.0
    %1044 = vmatprep.subr.mxu0 0.0
    %1045 = vmatpush1.xpose.msra.mxu0 0.0
    %1046 = vmatprep.subr.mxu0 0.0
    %1047 = vmatpush1.xpose.msra.mxu0 0.0
    %1048 = vmatprep.subr.mxu0 0.0
    %1049 = vmatpush1.xpose.msra.mxu0 0.0
    %1050 = vmatprep.subr.mxu0 0.0
    %1051 = vmatpush1.xpose.msra.mxu0 0.0
    %1052 = vmatprep.subr.mxu0 0.0
    %1053 = vmatpush1.xpose.msra.mxu0 0.0
    %1054 = vmatprep.subr.mxu0 0.0
    %1055 = vmatpush1.xpose.msra.mxu0 0.0
    %1056 = vmatprep.subr.mxu0 0.0
    %1057 = vmatpush1.xpose.msra.mxu0 0.0
    %1058 = vmatprep.subr.mxu0 0.0
    %1059 = vmatpush1.xpose.msra.mxu0 0.0
    %1060 = vmatprep.subr.mxu0 0.0
    %1061 = vmatpush1.xpose.msra.mxu0 %v1028
    %1062 = vmatprep.subr.mxu0 0.0
    %1063 = vmatpush2.xpose.msra.mxu0 0.0
    %1064 = vmatprep.subr.mxu0 0.0
    %1065 = vmatpush2.xpose.msra.mxu0 0.0
    %1066 = vmatprep.subr.mxu0 0.0
    %1067 = vmatpush2.xpose.msra.mxu0 0.0
    %1068 = vmatprep.subr.mxu0 0.0
    %1069 = vmatpush2.xpose.msra.mxu0 0.0
    %1070 = vmatprep.subr.mxu0 0.0
    %1071 = vmatpush2.xpose.msra.mxu0 0.0
    %1072 = vmatprep.subr.mxu0 0.0
    %1073 = vmatpush2.xpose.msra.mxu0 0.0
    %1074 = vmatprep.subr.mxu0 0.0
    %1075 = vmatpush2.xpose.msra.mxu0 0.0
    %1076 = vmatprep.subr.mxu0 0.0
    %1077 = vmatpush2.xpose.msra.mxu0 0.0
    %1078 = vmatprep.subr.mxu0 0.0
    %1079 = vmatpush2.xpose.msra.mxu0 0.0
    %1080 = vmatprep.subr.mxu0 0.0
    %1081 = vmatpush2.xpose.msra.mxu0 0.0
    %1082 = vmatprep.subr.mxu0 0.0
    %1083 = vmatpush2.xpose.msra.mxu0 0.0
    %1084 = vmatprep.subr.mxu0 0.0
    %1085 = vmatpush2.xpose.msra.mxu0 0.0
    %1086 = vmatprep.subr.mxu0 0.0
    %1087 = vmatpush2.xpose.msra.mxu0 0.0
    %1088 = vmatprep.subr.mxu0 0.0
    %1089 = vmatpush2.xpose.msra.mxu0 0.0
    %1090 = vmatprep.subr.mxu0 0.0
    %1091 = vmatpush2.xpose.msra.mxu0 0.0
    %1092 = vmatprep.subr.mxu0 0.0
    %1093 = vmatpush2.xpose.msra.mxu0 0.0
    %1094 = vmatprep.mubr.f32.mxu0 0.0
    %1095 = vmatmul.mubr.f32.gmra.mxu0 %v1026
    %v1096 = vpop.f32.mrf.mxu0
    %v1097 = vadd.f32 0.0, %v1096
    %v1098 = vpop.f32.mrf.mxu0
    %1099 = vdwg.mxu0
    %v1100 = vsel %vm118, %v1019, -inf
    %1101 = vmax.xlane.f32.xlu0 %v1100
    %v1102 = vpop.xlane.xlu0 %1101
    %v1103 = vsel %vm118, %v1097, -inf
    %1104 = vmax.xlane.f32.xlu0 %v1103
    %v1105 = vpop.xlane.xlu0 %1104
    %v1106 = vsub.f32 %v1019, %v1102
    %v1107 = vsub.f32 %v1097, %v1105
    %v1108 = vmul.f32 %v1106, 1.442695
    %v1109 = vpow.pop %v1108
    %v1110 = vmul.f32 %v1107, 1.442695
    %v1111 = vpow.pop %v1110
    %v1112 = vsel %vm118, %v1109, 0.0
    %1113 = vadd.xlane.f32.xlu0 %v1112
    %v1114 = vpop.xlane.xlu0 %1113
    %v1115 = vsel %vm118, %v1111, 0.0
    %1116 = vadd.xlane.f32.xlu0 %v1115
    %v1117 = vpop.xlane.xlu0 %1116
    %v1118 = vrcp.pop %v1114
    %v1119 = vrcp.pop %v1117
    %v1120 = vmul.f32 %v1109, %v1118
    %v1121 = vmul.f32 %v1111, %v1119
    %1122 = vrot.lane.b32.xlu0 %v107, 48
    %v1123 = vpop.permute.xlu0 %1122
    %v1126 = vsel %vm118, %v1120, 0
    %1128 = vmatprep.subr.mxu0 0.0
    %1129 = vmatpush1.msra.mxu0 0.0
    %1130 = vmatprep.subr.mxu0 0.0
    %1131 = vmatpush1.msra.mxu0 0.0
    %1132 = vmatprep.subr.mxu0 0.0
    %1133 = vmatpush1.msra.mxu0 0.0
    %1134 = vmatprep.subr.mxu0 0.0
    %1135 = vmatpush1.msra.mxu0 0.0
    %1136 = vmatprep.subr.mxu0 0.0
    %1137 = vmatpush1.msra.mxu0 0.0
    %1138 = vmatprep.subr.mxu0 0.0
    %1139 = vmatpush1.msra.mxu0 0.0
    %1140 = vmatprep.subr.mxu0 0.0
    %1141 = vmatpush1.msra.mxu0 0.0
    %1142 = vmatprep.subr.mxu0 0.0
    %1143 = vmatpush1.msra.mxu0 0.0
    %1144 = vmatprep.subr.mxu0 0.0
    %1145 = vmatpush1.msra.mxu0 0.0
    %1146 = vmatprep.subr.mxu0 0.0
    %1147 = vmatpush1.msra.mxu0 0.0
    %1148 = vmatprep.subr.mxu0 0.0
    %1149 = vmatpush1.msra.mxu0 0.0
    %1150 = vmatprep.subr.mxu0 0.0
    %1151 = vmatpush1.msra.mxu0 0.0
    %1152 = vmatprep.subr.mxu0 0.0
    %1153 = vmatpush1.msra.mxu0 0.0
    %1154 = vmatprep.subr.mxu0 0.0
    %1155 = vmatpush1.msra.mxu0 0.0
    %1156 = vmatprep.subr.mxu0 0.0
    %1157 = vmatpush1.msra.mxu0 0.0
    %1158 = vmatprep.subr.mxu0 0.0
    %1159 = vmatpush1.msra.mxu0 %v1123
    %1160 = vmatprep.subr.mxu0 0.0
    %1161 = vmatpush2.msra.mxu0 0.0
    %1162 = vmatprep.subr.mxu0 0.0
    %1163 = vmatpush2.msra.mxu0 0.0
    %1164 = vmatprep.subr.mxu0 0.0
    %1165 = vmatpush2.msra.mxu0 0.0
    %1166 = vmatprep.subr.mxu0 0.0
    %1167 = vmatpush2.msra.mxu0 0.0
    %1168 = vmatprep.subr.mxu0 0.0
    %1169 = vmatpush2.msra.mxu0 0.0
    %1170 = vmatprep.subr.mxu0 0.0
    %1171 = vmatpush2.msra.mxu0 0.0
    %1172 = vmatprep.subr.mxu0 0.0
    %1173 = vmatpush2.msra.mxu0 0.0
    %1174 = vmatprep.subr.mxu0 0.0
    %1175 = vmatpush2.msra.mxu0 0.0
    %1176 = vmatprep.subr.mxu0 0.0
    %1177 = vmatpush2.msra.mxu0 0.0
    %1178 = vmatprep.subr.mxu0 0.0
    %1179 = vmatpush2.msra.mxu0 0.0
    %1180 = vmatprep.subr.mxu0 0.0
    %1181 = vmatpush2.msra.mxu0 0.0
    %1182 = vmatprep.subr.mxu0 0.0
    %1183 = vmatpush2.msra.mxu0 0.0
    %1184 = vmatprep.subr.mxu0 0.0
    %1185 = vmatpush2.msra.mxu0 0.0
    %1186 = vmatprep.subr.mxu0 0.0
    %1187 = vmatpush2.msra.mxu0 0.0
    %1188 = vmatprep.subr.mxu0 0.0
    %1189 = vmatpush2.msra.mxu0 0.0
    %1190 = vmatprep.subr.mxu0 0.0
    %1191 = vmatpush2.msra.mxu0 0.0
    %1192 = vmatprep.mubr.f32.mxu0 0.0
    %1193 = vmatmul.mubr.f32.gmra.mxu0 %v1126
    %v1194 = vpop.f32.mrf.mxu0
    %v1195 = vadd.f32 0.0, %v1194
    %v1196 = vpop.f32.mrf.mxu0
    %1197 = vdwg.mxu0
    %1198 = vrot.lane.b32.xlu0 %v112, 48
    %v1199 = vpop.permute.xlu0 %1198
    %v1202 = vsel %vm118, %v1121, 0
    %1204 = vmatprep.subr.mxu0 0.0
    %1205 = vmatpush1.msra.mxu0 0.0
    %1206 = vmatprep.subr.mxu0 0.0
    %1207 = vmatpush1.msra.mxu0 0.0
    %1208 = vmatprep.subr.mxu0 0.0
    %1209 = vmatpush1.msra.mxu0 0.0
    %1210 = vmatprep.subr.mxu0 0.0
    %1211 = vmatpush1.msra.mxu0 0.0
    %1212 = vmatprep.subr.mxu0 0.0
    %1213 = vmatpush1.msra.mxu0 0.0
    %1214 = vmatprep.subr.mxu0 0.0
    %1215 = vmatpush1.msra.mxu0 0.0
    %1216 = vmatprep.subr.mxu0 0.0
    %1217 = vmatpush1.msra.mxu0 0.0
    %1218 = vmatprep.subr.mxu0 0.0
    %1219 = vmatpush1.msra.mxu0 0.0
    %1220 = vmatprep.subr.mxu0 0.0
    %1221 = vmatpush1.msra.mxu0 0.0
    %1222 = vmatprep.subr.mxu0 0.0
    %1223 = vmatpush1.msra.mxu0 0.0
    %1224 = vmatprep.subr.mxu0 0.0
    %1225 = vmatpush1.msra.mxu0 0.0
    %1226 = vmatprep.subr.mxu0 0.0
    %1227 = vmatpush1.msra.mxu0 0.0
    %1228 = vmatprep.subr.mxu0 0.0
    %1229 = vmatpush1.msra.mxu0 0.0
    %1230 = vmatprep.subr.mxu0 0.0
    %1231 = vmatpush1.msra.mxu0 0.0
    %1232 = vmatprep.subr.mxu0 0.0
    %1233 = vmatpush1.msra.mxu0 0.0
    %1234 = vmatprep.subr.mxu0 0.0
    %1235 = vmatpush1.msra.mxu0 %v1199
    %1236 = vmatprep.subr.mxu0 0.0
    %1237 = vmatpush2.msra.mxu0 0.0
    %1238 = vmatprep.subr.mxu0 0.0
    %1239 = vmatpush2.msra.mxu0 0.0
    %1240 = vmatprep.subr.mxu0 0.0
    %1241 = vmatpush2.msra.mxu0 0.0
    %1242 = vmatprep.subr.mxu0 0.0
    %1243 = vmatpush2.msra.mxu0 0.0
    %1244 = vmatprep.subr.mxu0 0.0
    %1245 = vmatpush2.msra.mxu0 0.0
    %1246 = vmatprep.subr.mxu0 0.0
    %1247 = vmatpush2.msra.mxu0 0.0
    %1248 = vmatprep.subr.mxu0 0.0
    %1249 = vmatpush2.msra.mxu0 0.0
    %1250 = vmatprep.subr.mxu0 0.0
    %1251 = vmatpush2.msra.mxu0 0.0
    %1252 = vmatprep.subr.mxu0 0.0
    %1253 = vmatpush2.msra.mxu0 0.0
    %1254 = vmatprep.subr.mxu0 0.0
    %1255 = vmatpush2.msra.mxu0 0.0
    %1256 = vmatprep.subr.mxu0 0.0
    %1257 = vmatpush2.msra.mxu0 0.0
    %1258 = vmatprep.subr.mxu0 0.0
    %1259 = vmatpush2.msra.mxu0 0.0
    %1260 = vmatprep.subr.mxu0 0.0
    %1261 = vmatpush2.msra.mxu0 0.0
    %1262 = vmatprep.subr.mxu0 0.0
    %1263 = vmatpush2.msra.mxu0 0.0
    %1264 = vmatprep.subr.mxu0 0.0
    %1265 = vmatpush2.msra.mxu0 0.0
    %1266 = vmatprep.subr.mxu0 0.0
    %1267 = vmatpush2.msra.mxu0 0.0
    %1268 = vmatprep.mubr.f32.mxu0 0.0
    %1269 = vmatmul.mubr.f32.gmra.mxu0 %v1202
    %v1270 = vpop.f32.mrf.mxu0
    %v1271 = vadd.f32 0.0, %v1270
    %v1272 = vpop.f32.mrf.mxu0
    %1273 = vdwg.mxu0
    %1275 = vrot.lane.b32.xlu0 %v24, 32
    %v1276 = vpop.permute.xlu0 %1275
    %v1279 = vsel %vm118, %v1195, 0
    %v1282 = vsel %vm118, %v1271, 0
    %1284 = vmatprep.subr.mxu0 0.0
    %1285 = vmatpush1.msra.mxu0 0.0
    %1286 = vmatprep.subr.mxu0 0.0
    %1287 = vmatpush1.msra.mxu0 0.0
    %1288 = vmatprep.subr.mxu0 0.0
    %1289 = vmatpush1.msra.mxu0 0.0
    %1290 = vmatprep.subr.mxu0 0.0
    %1291 = vmatpush1.msra.mxu0 0.0
    %1292 = vmatprep.subr.mxu0 0.0
    %1293 = vmatpush1.msra.mxu0 0.0
    %1294 = vmatprep.subr.mxu0 0.0
    %1295 = vmatpush1.msra.mxu0 0.0
    %1296 = vmatprep.subr.mxu0 0.0
    %1297 = vmatpush1.msra.mxu0 0.0
    %1298 = vmatprep.subr.mxu0 0.0
    %1299 = vmatpush1.msra.mxu0 0.0
    %1300 = vmatprep.subr.mxu0 0.0
    %1301 = vmatpush1.msra.mxu0 0.0
    %1302 = vmatprep.subr.mxu0 0.0
    %1303 = vmatpush1.msra.mxu0 0.0
    %1304 = vmatprep.subr.mxu0 0.0
    %1305 = vmatpush1.msra.mxu0 0.0
    %1306 = vmatprep.subr.mxu0 0.0
    %1307 = vmatpush1.msra.mxu0 0.0
    %1308 = vmatprep.subr.mxu0 0.0
    %1309 = vmatpush1.msra.mxu0 0.0
    %1310 = vmatprep.subr.mxu0 0.0
    %1311 = vmatpush1.msra.mxu0 0.0
    %1312 = vmatprep.subr.mxu0 0.0
    %1313 = vmatpush1.msra.mxu0 0.0
    %1314 = vmatprep.subr.mxu0 0.0
    %1315 = vmatpush1.msra.mxu0 %v1276
    %1316 = vmatprep.subr.mxu0 0.0
    %1317 = vmatpush2.msra.mxu0 0.0
    %1318 = vmatprep.subr.mxu0 0.0
    %1319 = vmatpush2.msra.mxu0 0.0
    %1320 = vmatprep.subr.mxu0 0.0
    %1321 = vmatpush2.msra.mxu0 0.0
    %1322 = vmatprep.subr.mxu0 0.0
    %1323 = vmatpush2.msra.mxu0 0.0
    %1324 = vmatprep.subr.mxu0 0.0
    %1325 = vmatpush2.msra.mxu0 0.0
    %1326 = vmatprep.subr.mxu0 0.0
    %1327 = vmatpush2.msra.mxu0 0.0
    %1328 = vmatprep.subr.mxu0 0.0
    %1329 = vmatpush2.msra.mxu0 0.0
    %1330 = vmatprep.subr.mxu0 0.0
    %1331 = vmatpush2.msra.mxu0 0.0
    %1332 = vmatprep.subr.mxu0 0.0
    %1333 = vmatpush2.msra.mxu0 0.0
    %1334 = vmatprep.subr.mxu0 0.0
    %1335 = vmatpush2.msra.mxu0 0.0
    %1336 = vmatprep.subr.mxu0 0.0
    %1337 = vmatpush2.msra.mxu0 0.0
    %1338 = vmatprep.subr.mxu0 0.0
    %1339 = vmatpush2.msra.mxu0 0.0
    %1340 = vmatprep.subr.mxu0 0.0
    %1341 = vmatpush2.msra.mxu0 0.0
    %1342 = vmatprep.subr.mxu0 0.0
    %1343 = vmatpush2.msra.mxu0 0.0
    %1344 = vmatprep.subr.mxu0 0.0
    %1345 = vmatpush2.msra.mxu0 0.0
    %1346 = vmatprep.subr.mxu0 0.0
    %1347 = vmatpush2.msra.mxu0 0.0
    %1348 = vmatprep.mubr.f32.mxu0 0.0
    %1349 = vmatmul.mubr.f32.gmra.mxu0 %v1279
    %v1350 = vpop.f32.mrf.mxu0
    %v1351 = vadd.f32 0.0, %v1350
    %v1352 = vpop.f32.mrf.mxu0
    %1353 = vmatprep.mubr.f32.mxu0 0.0
    %1354 = vmatmul.mubr.f32.gmra.mxu0 %v1282
    %v1355 = vpop.f32.mrf.mxu0
    %v1356 = vadd.f32 0.0, %v1355
    %v1357 = vpop.f32.mrf.mxu0
    %1358 = vdwg.mxu0
    %v1359 = vadd.f32 %v936, %v1351
    %v1360 = vadd.f32 %v941, %v1356
    %1361 = vrot.lane.b32.xlu0 %v107, 104
    %v1362 = vpop.permute.xlu0 %1361
    %1363 = vrot.lane.b32.xlu0 %v107, 72
    %v1364 = vpop.permute.xlu0 %1363
    %v1365 = vsel %vm118, %v1362, 0
    %v1367 = vsel %vm118, %v1364, 0
    %1369 = vmatprep.subr.mxu0 0.0
    %1370 = vmatpush1.xpose.msra.mxu0 0.0
    %1371 = vmatprep.subr.mxu0 0.0
    %1372 = vmatpush1.xpose.msra.mxu0 0.0
    %1373 = vmatprep.subr.mxu0 0.0
    %1374 = vmatpush1.xpose.msra.mxu0 0.0
    %1375 = vmatprep.subr.mxu0 0.0
    %1376 = vmatpush1.xpose.msra.mxu0 0.0
    %1377 = vmatprep.subr.mxu0 0.0
    %1378 = vmatpush1.xpose.msra.mxu0 0.0
    %1379 = vmatprep.subr.mxu0 0.0
    %1380 = vmatpush1.xpose.msra.mxu0 0.0
    %1381 = vmatprep.subr.mxu0 0.0
    %1382 = vmatpush1.xpose.msra.mxu0 0.0
    %1383 = vmatprep.subr.mxu0 0.0
    %1384 = vmatpush1.xpose.msra.mxu0 0.0
    %1385 = vmatprep.subr.mxu0 0.0
    %1386 = vmatpush1.xpose.msra.mxu0 0.0
    %1387 = vmatprep.subr.mxu0 0.0
    %1388 = vmatpush1.xpose.msra.mxu0 0.0
    %1389 = vmatprep.subr.mxu0 0.0
    %1390 = vmatpush1.xpose.msra.mxu0 0.0
    %1391 = vmatprep.subr.mxu0 0.0
    %1392 = vmatpush1.xpose.msra.mxu0 0.0
    %1393 = vmatprep.subr.mxu0 0.0
    %1394 = vmatpush1.xpose.msra.mxu0 0.0
    %1395 = vmatprep.subr.mxu0 0.0
    %1396 = vmatpush1.xpose.msra.mxu0 0.0
    %1397 = vmatprep.subr.mxu0 0.0
    %1398 = vmatpush1.xpose.msra.mxu0 0.0
    %1399 = vmatprep.subr.mxu0 0.0
    %1400 = vmatpush1.xpose.msra.mxu0 %v1367
    %1401 = vmatprep.subr.mxu0 0.0
    %1402 = vmatpush2.xpose.msra.mxu0 0.0
    %1403 = vmatprep.subr.mxu0 0.0
    %1404 = vmatpush2.xpose.msra.mxu0 0.0
    %1405 = vmatprep.subr.mxu0 0.0
    %1406 = vmatpush2.xpose.msra.mxu0 0.0
    %1407 = vmatprep.subr.mxu0 0.0
    %1408 = vmatpush2.xpose.msra.mxu0 0.0
    %1409 = vmatprep.subr.mxu0 0.0
    %1410 = vmatpush2.xpose.msra.mxu0 0.0
    %1411 = vmatprep.subr.mxu0 0.0
    %1412 = vmatpush2.xpose.msra.mxu0 0.0
    %1413 = vmatprep.subr.mxu0 0.0
    %1414 = vmatpush2.xpose.msra.mxu0 0.0
    %1415 = vmatprep.subr.mxu0 0.0
    %1416 = vmatpush2.xpose.msra.mxu0 0.0
    %1417 = vmatprep.subr.mxu0 0.0
    %1418 = vmatpush2.xpose.msra.mxu0 0.0
    %1419 = vmatprep.subr.mxu0 0.0
    %1420 = vmatpush2.xpose.msra.mxu0 0.0
    %1421 = vmatprep.subr.mxu0 0.0
    %1422 = vmatpush2.xpose.msra.mxu0 0.0
    %1423 = vmatprep.subr.mxu0 0.0
    %1424 = vmatpush2.xpose.msra.mxu0 0.0
    %1425 = vmatprep.subr.mxu0 0.0
    %1426 = vmatpush2.xpose.msra.mxu0 0.0
    %1427 = vmatprep.subr.mxu0 0.0
    %1428 = vmatpush2.xpose.msra.mxu0 0.0
    %1429 = vmatprep.subr.mxu0 0.0
    %1430 = vmatpush2.xpose.msra.mxu0 0.0
    %1431 = vmatprep.subr.mxu0 0.0
    %1432 = vmatpush2.xpose.msra.mxu0 0.0
    %1433 = vmatprep.mubr.f32.mxu0 0.0
    %1434 = vmatmul.mubr.f32.gmra.mxu0 %v1365
    %v1435 = vpop.f32.mrf.mxu0
    %v1436 = vadd.f32 0.0, %v1435
    %v1437 = vpop.f32.mrf.mxu0
    %1438 = vdwg.mxu0
    %1439 = vrot.lane.b32.xlu0 %v112, 104
    %v1440 = vpop.permute.xlu0 %1439
    %1441 = vrot.lane.b32.xlu0 %v112, 72
    %v1442 = vpop.permute.xlu0 %1441
    %v1443 = vsel %vm118, %v1440, 0
    %v1445 = vsel %vm118, %v1442, 0
    %1447 = vmatprep.subr.mxu0 0.0
    %1448 = vmatpush1.xpose.msra.mxu0 0.0
    %1449 = vmatprep.subr.mxu0 0.0
    %1450 = vmatpush1.xpose.msra.mxu0 0.0
    %1451 = vmatprep.subr.mxu0 0.0
    %1452 = vmatpush1.xpose.msra.mxu0 0.0
    %1453 = vmatprep.subr.mxu0 0.0
    %1454 = vmatpush1.xpose.msra.mxu0 0.0
    %1455 = vmatprep.subr.mxu0 0.0
    %1456 = vmatpush1.xpose.msra.mxu0 0.0
    %1457 = vmatprep.subr.mxu0 0.0
    %1458 = vmatpush1.xpose.msra.mxu0 0.0
    %1459 = vmatprep.subr.mxu0 0.0
    %1460 = vmatpush1.xpose.msra.mxu0 0.0
    %1461 = vmatprep.subr.mxu0 0.0
    %1462 = vmatpush1.xpose.msra.mxu0 0.0
    %1463 = vmatprep.subr.mxu0 0.0
    %1464 = vmatpush1.xpose.msra.mxu0 0.0
    %1465 = vmatprep.subr.mxu0 0.0
    %1466 = vmatpush1.xpose.msra.mxu0 0.0
    %1467 = vmatprep.subr.mxu0 0.0
    %1468 = vmatpush1.xpose.msra.mxu0 0.0
    %1469 = vmatprep.subr.mxu0 0.0
    %1470 = vmatpush1.xpose.msra.mxu0 0.0
    %1471 = vmatprep.subr.mxu0 0.0
    %1472 = vmatpush1.xpose.msra.mxu0 0.0
    %1473 = vmatprep.subr.mxu0 0.0
    %1474 = vmatpush1.xpose.msra.mxu0 0.0
    %1475 = vmatprep.subr.mxu0 0.0
    %1476 = vmatpush1.xpose.msra.mxu0 0.0
    %1477 = vmatprep.subr.mxu0 0.0
    %1478 = vmatpush1.xpose.msra.mxu0 %v1445
    %1479 = vmatprep.subr.mxu0 0.0
    %1480 = vmatpush2.xpose.msra.mxu0 0.0
    %1481 = vmatprep.subr.mxu0 0.0
    %1482 = vmatpush2.xpose.msra.mxu0 0.0
    %1483 = vmatprep.subr.mxu0 0.0
    %1484 = vmatpush2.xpose.msra.mxu0 0.0
    %1485 = vmatprep.subr.mxu0 0.0
    %1486 = vmatpush2.xpose.msra.mxu0 0.0
    %1487 = vmatprep.subr.mxu0 0.0
    %1488 = vmatpush2.xpose.msra.mxu0 0.0
    %1489 = vmatprep.subr.mxu0 0.0
    %1490 = vmatpush2.xpose.msra.mxu0 0.0
    %1491 = vmatprep.subr.mxu0 0.0
    %1492 = vmatpush2.xpose.msra.mxu0 0.0
    %1493 = vmatprep.subr.mxu0 0.0
    %1494 = vmatpush2.xpose.msra.mxu0 0.0
    %1495 = vmatprep.subr.mxu0 0.0
    %1496 = vmatpush2.xpose.msra.mxu0 0.0
    %1497 = vmatprep.subr.mxu0 0.0
    %1498 = vmatpush2.xpose.msra.mxu0 0.0
    %1499 = vmatprep.subr.mxu0 0.0
    %1500 = vmatpush2.xpose.msra.mxu0 0.0
    %1501 = vmatprep.subr.mxu0 0.0
    %1502 = vmatpush2.xpose.msra.mxu0 0.0
    %1503 = vmatprep.subr.mxu0 0.0
    %1504 = vmatpush2.xpose.msra.mxu0 0.0
    %1505 = vmatprep.subr.mxu0 0.0
    %1506 = vmatpush2.xpose.msra.mxu0 0.0
    %1507 = vmatprep.subr.mxu0 0.0
    %1508 = vmatpush2.xpose.msra.mxu0 0.0
    %1509 = vmatprep.subr.mxu0 0.0
    %1510 = vmatpush2.xpose.msra.mxu0 0.0
    %1511 = vmatprep.mubr.f32.mxu0 0.0
    %1512 = vmatmul.mubr.f32.gmra.mxu0 %v1443
    %v1513 = vpop.f32.mrf.mxu0
    %v1514 = vadd.f32 0.0, %v1513
    %v1515 = vpop.f32.mrf.mxu0
    %1516 = vdwg.mxu0
    %v1517 = vsel %vm118, %v1436, -inf
    %1518 = vmax.xlane.f32.xlu0 %v1517
    %v1519 = vpop.xlane.xlu0 %1518
    %v1520 = vsel %vm118, %v1514, -inf
    %1521 = vmax.xlane.f32.xlu0 %v1520
    %v1522 = vpop.xlane.xlu0 %1521
    %v1523 = vsub.f32 %v1436, %v1519
    %v1524 = vsub.f32 %v1514, %v1522
    %v1525 = vmul.f32 %v1523, 1.442695
    %v1526 = vpow.pop %v1525
    %v1527 = vmul.f32 %v1524, 1.442695
    %v1528 = vpow.pop %v1527
    %v1529 = vsel %vm118, %v1526, 0.0
    %1530 = vadd.xlane.f32.xlu0 %v1529
    %v1531 = vpop.xlane.xlu0 %1530
    %v1532 = vsel %vm118, %v1528, 0.0
    %1533 = vadd.xlane.f32.xlu0 %v1532
    %v1534 = vpop.xlane.xlu0 %1533
    %v1535 = vrcp.pop %v1531
    %v1536 = vrcp.pop %v1534
    %v1537 = vmul.f32 %v1526, %v1535
    %v1538 = vmul.f32 %v1528, %v1536
    %1539 = vrot.lane.b32.xlu0 %v107, 40
    %v1540 = vpop.permute.xlu0 %1539
    %v1543 = vsel %vm118, %v1537, 0
    %1545 = vmatprep.subr.mxu0 0.0
    %1546 = vmatpush1.msra.mxu0 0.0
    %1547 = vmatprep.subr.mxu0 0.0
    %1548 = vmatpush1.msra.mxu0 0.0
    %1549 = vmatprep.subr.mxu0 0.0
    %1550 = vmatpush1.msra.mxu0 0.0
    %1551 = vmatprep.subr.mxu0 0.0
    %1552 = vmatpush1.msra.mxu0 0.0
    %1553 = vmatprep.subr.mxu0 0.0
    %1554 = vmatpush1.msra.mxu0 0.0
    %1555 = vmatprep.subr.mxu0 0.0
    %1556 = vmatpush1.msra.mxu0 0.0
    %1557 = vmatprep.subr.mxu0 0.0
    %1558 = vmatpush1.msra.mxu0 0.0
    %1559 = vmatprep.subr.mxu0 0.0
    %1560 = vmatpush1.msra.mxu0 0.0
    %1561 = vmatprep.subr.mxu0 0.0
    %1562 = vmatpush1.msra.mxu0 0.0
    %1563 = vmatprep.subr.mxu0 0.0
    %1564 = vmatpush1.msra.mxu0 0.0
    %1565 = vmatprep.subr.mxu0 0.0
    %1566 = vmatpush1.msra.mxu0 0.0
    %1567 = vmatprep.subr.mxu0 0.0
    %1568 = vmatpush1.msra.mxu0 0.0
    %1569 = vmatprep.subr.mxu0 0.0
    %1570 = vmatpush1.msra.mxu0 0.0
    %1571 = vmatprep.subr.mxu0 0.0
    %1572 = vmatpush1.msra.mxu0 0.0
    %1573 = vmatprep.subr.mxu0 0.0
    %1574 = vmatpush1.msra.mxu0 0.0
    %1575 = vmatprep.subr.mxu0 0.0
    %1576 = vmatpush1.msra.mxu0 %v1540
    %1577 = vmatprep.subr.mxu0 0.0
    %1578 = vmatpush2.msra.mxu0 0.0
    %1579 = vmatprep.subr.mxu0 0.0
    %1580 = vmatpush2.msra.mxu0 0.0
    %1581 = vmatprep.subr.mxu0 0.0
    %1582 = vmatpush2.msra.mxu0 0.0
    %1583 = vmatprep.subr.mxu0 0.0
    %1584 = vmatpush2.msra.mxu0 0.0
    %1585 = vmatprep.subr.mxu0 0.0
    %1586 = vmatpush2.msra.mxu0 0.0
    %1587 = vmatprep.subr.mxu0 0.0
    %1588 = vmatpush2.msra.mxu0 0.0
    %1589 = vmatprep.subr.mxu0 0.0
    %1590 = vmatpush2.msra.mxu0 0.0
    %1591 = vmatprep.subr.mxu0 0.0
    %1592 = vmatpush2.msra.mxu0 0.0
    %1593 = vmatprep.subr.mxu0 0.0
    %1594 = vmatpush2.msra.mxu0 0.0
    %1595 = vmatprep.subr.mxu0 0.0
    %1596 = vmatpush2.msra.mxu0 0.0
    %1597 = vmatprep.subr.mxu0 0.0
    %1598 = vmatpush2.msra.mxu0 0.0
    %1599 = vmatprep.subr.mxu0 0.0
    %1600 = vmatpush2.msra.mxu0 0.0
    %1601 = vmatprep.subr.mxu0 0.0
    %1602 = vmatpush2.msra.mxu0 0.0
    %1603 = vmatprep.subr.mxu0 0.0
    %1604 = vmatpush2.msra.mxu0 0.0
    %1605 = vmatprep.subr.mxu0 0.0
    %1606 = vmatpush2.msra.mxu0 0.0
    %1607 = vmatprep.subr.mxu0 0.0
    %1608 = vmatpush2.msra.mxu0 0.0
    %1609 = vmatprep.mubr.f32.mxu0 0.0
    %1610 = vmatmul.mubr.f32.gmra.mxu0 %v1543
    %v1611 = vpop.f32.mrf.mxu0
    %v1612 = vadd.f32 0.0, %v1611
    %v1613 = vpop.f32.mrf.mxu0
    %1614 = vdwg.mxu0
    %1615 = vrot.lane.b32.xlu0 %v112, 40
    %v1616 = vpop.permute.xlu0 %1615
    %v1619 = vsel %vm118, %v1538, 0
    %1621 = vmatprep.subr.mxu0 0.0
    %1622 = vmatpush1.msra.mxu0 0.0
    %1623 = vmatprep.subr.mxu0 0.0
    %1624 = vmatpush1.msra.mxu0 0.0
    %1625 = vmatprep.subr.mxu0 0.0
    %1626 = vmatpush1.msra.mxu0 0.0
    %1627 = vmatprep.subr.mxu0 0.0
    %1628 = vmatpush1.msra.mxu0 0.0
    %1629 = vmatprep.subr.mxu0 0.0
    %1630 = vmatpush1.msra.mxu0 0.0
    %1631 = vmatprep.subr.mxu0 0.0
    %1632 = vmatpush1.msra.mxu0 0.0
    %1633 = vmatprep.subr.mxu0 0.0
    %1634 = vmatpush1.msra.mxu0 0.0
    %1635 = vmatprep.subr.mxu0 0.0
    %1636 = vmatpush1.msra.mxu0 0.0
    %1637 = vmatprep.subr.mxu0 0.0
    %1638 = vmatpush1.msra.mxu0 0.0
    %1639 = vmatprep.subr.mxu0 0.0
    %1640 = vmatpush1.msra.mxu0 0.0
    %1641 = vmatprep.subr.mxu0 0.0
    %1642 = vmatpush1.msra.mxu0 0.0
    %1643 = vmatprep.subr.mxu0 0.0
    %1644 = vmatpush1.msra.mxu0 0.0
    %1645 = vmatprep.subr.mxu0 0.0
    %1646 = vmatpush1.msra.mxu0 0.0
    %1647 = vmatprep.subr.mxu0 0.0
    %1648 = vmatpush1.msra.mxu0 0.0
    %1649 = vmatprep.subr.mxu0 0.0
    %1650 = vmatpush1.msra.mxu0 0.0
    %1651 = vmatprep.subr.mxu0 0.0
    %1652 = vmatpush1.msra.mxu0 %v1616
    %1653 = vmatprep.subr.mxu0 0.0
    %1654 = vmatpush2.msra.mxu0 0.0
    %1655 = vmatprep.subr.mxu0 0.0
    %1656 = vmatpush2.msra.mxu0 0.0
    %1657 = vmatprep.subr.mxu0 0.0
    %1658 = vmatpush2.msra.mxu0 0.0
    %1659 = vmatprep.subr.mxu0 0.0
    %1660 = vmatpush2.msra.mxu0 0.0
    %1661 = vmatprep.subr.mxu0 0.0
    %1662 = vmatpush2.msra.mxu0 0.0
    %1663 = vmatprep.subr.mxu0 0.0
    %1664 = vmatpush2.msra.mxu0 0.0
    %1665 = vmatprep.subr.mxu0 0.0
    %1666 = vmatpush2.msra.mxu0 0.0
    %1667 = vmatprep.subr.mxu0 0.0
    %1668 = vmatpush2.msra.mxu0 0.0
    %1669 = vmatprep.subr.mxu0 0.0
    %1670 = vmatpush2.msra.mxu0 0.0
    %1671 = vmatprep.subr.mxu0 0.0
    %1672 = vmatpush2.msra.mxu0 0.0
    %1673 = vmatprep.subr.mxu0 0.0
    %1674 = vmatpush2.msra.mxu0 0.0
    %1675 = vmatprep.subr.mxu0 0.0
    %1676 = vmatpush2.msra.mxu0 0.0
    %1677 = vmatprep.subr.mxu0 0.0
    %1678 = vmatpush2.msra.mxu0 0.0
    %1679 = vmatprep.subr.mxu0 0.0
    %1680 = vmatpush2.msra.mxu0 0.0
    %1681 = vmatprep.subr.mxu0 0.0
    %1682 = vmatpush2.msra.mxu0 0.0
    %1683 = vmatprep.subr.mxu0 0.0
    %1684 = vmatpush2.msra.mxu0 0.0
    %1685 = vmatprep.mubr.f32.mxu0 0.0
    %1686 = vmatmul.mubr.f32.gmra.mxu0 %v1619
    %v1687 = vpop.f32.mrf.mxu0
    %v1688 = vadd.f32 0.0, %v1687
    %v1689 = vpop.f32.mrf.mxu0
    %1690 = vdwg.mxu0
    %1692 = vrot.lane.b32.xlu0 %v26, 32
    %v1693 = vpop.permute.xlu0 %1692
    %v1696 = vsel %vm118, %v1612, 0
    %v1699 = vsel %vm118, %v1688, 0
    %1701 = vmatprep.subr.mxu0 0.0
    %1702 = vmatpush1.msra.mxu0 0.0
    %1703 = vmatprep.subr.mxu0 0.0
    %1704 = vmatpush1.msra.mxu0 0.0
    %1705 = vmatprep.subr.mxu0 0.0
    %1706 = vmatpush1.msra.mxu0 0.0
    %1707 = vmatprep.subr.mxu0 0.0
    %1708 = vmatpush1.msra.mxu0 0.0
    %1709 = vmatprep.subr.mxu0 0.0
    %1710 = vmatpush1.msra.mxu0 0.0
    %1711 = vmatprep.subr.mxu0 0.0
    %1712 = vmatpush1.msra.mxu0 0.0
    %1713 = vmatprep.subr.mxu0 0.0
    %1714 = vmatpush1.msra.mxu0 0.0
    %1715 = vmatprep.subr.mxu0 0.0
    %1716 = vmatpush1.msra.mxu0 0.0
    %1717 = vmatprep.subr.mxu0 0.0
    %1718 = vmatpush1.msra.mxu0 0.0
    %1719 = vmatprep.subr.mxu0 0.0
    %1720 = vmatpush1.msra.mxu0 0.0
    %1721 = vmatprep.subr.mxu0 0.0
    %1722 = vmatpush1.msra.mxu0 0.0
    %1723 = vmatprep.subr.mxu0 0.0
    %1724 = vmatpush1.msra.mxu0 0.0
    %1725 = vmatprep.subr.mxu0 0.0
    %1726 = vmatpush1.msra.mxu0 0.0
    %1727 = vmatprep.subr.mxu0 0.0
    %1728 = vmatpush1.msra.mxu0 0.0
    %1729 = vmatprep.subr.mxu0 0.0
    %1730 = vmatpush1.msra.mxu0 0.0
    %1731 = vmatprep.subr.mxu0 0.0
    %1732 = vmatpush1.msra.mxu0 %v1693
    %1733 = vmatprep.subr.mxu0 0.0
    %1734 = vmatpush2.msra.mxu0 0.0
    %1735 = vmatprep.subr.mxu0 0.0
    %1736 = vmatpush2.msra.mxu0 0.0
    %1737 = vmatprep.subr.mxu0 0.0
    %1738 = vmatpush2.msra.mxu0 0.0
    %1739 = vmatprep.subr.mxu0 0.0
    %1740 = vmatpush2.msra.mxu0 0.0
    %1741 = vmatprep.subr.mxu0 0.0
    %1742 = vmatpush2.msra.mxu0 0.0
    %1743 = vmatprep.subr.mxu0 0.0
    %1744 = vmatpush2.msra.mxu0 0.0
    %1745 = vmatprep.subr.mxu0 0.0
    %1746 = vmatpush2.msra.mxu0 0.0
    %1747 = vmatprep.subr.mxu0 0.0
    %1748 = vmatpush2.msra.mxu0 0.0
    %1749 = vmatprep.subr.mxu0 0.0
    %1750 = vmatpush2.msra.mxu0 0.0
    %1751 = vmatprep.subr.mxu0 0.0
    %1752 = vmatpush2.msra.mxu0 0.0
    %1753 = vmatprep.subr.mxu0 0.0
    %1754 = vmatpush2.msra.mxu0 0.0
    %1755 = vmatprep.subr.mxu0 0.0
    %1756 = vmatpush2.msra.mxu0 0.0
    %1757 = vmatprep.subr.mxu0 0.0
    %1758 = vmatpush2.msra.mxu0 0.0
    %1759 = vmatprep.subr.mxu0 0.0
    %1760 = vmatpush2.msra.mxu0 0.0
    %1761 = vmatprep.subr.mxu0 0.0
    %1762 = vmatpush2.msra.mxu0 0.0
    %1763 = vmatprep.subr.mxu0 0.0
    %1764 = vmatpush2.msra.mxu0 0.0
    %1765 = vmatprep.mubr.f32.mxu0 0.0
    %1766 = vmatmul.mubr.f32.gmra.mxu0 %v1696
    %v1767 = vpop.f32.mrf.mxu0
    %v1768 = vadd.f32 0.0, %v1767
    %v1769 = vpop.f32.mrf.mxu0
    %1770 = vmatprep.mubr.f32.mxu0 0.0
    %1771 = vmatmul.mubr.f32.gmra.mxu0 %v1699
    %v1772 = vpop.f32.mrf.mxu0
    %v1773 = vadd.f32 0.0, %v1772
    %v1774 = vpop.f32.mrf.mxu0
    %1775 = vdwg.mxu0
    %v1776 = vadd.f32 %v1359, %v1768
    %v1777 = vadd.f32 %v1360, %v1773
    %v1778 = vlaneseq
    %v1779 = vshrl.u32 %v1778, 7
    %v1780 = vsub.s32 1, %v1779
    %v1781 = vrot.slane %v28, %v1780
    %v1782 = vadd.f32 %v1776, %v1781
    %v1783 = vadd.f32 %v1777, %v1781
    %v1784 = vsel %vm33, %v1782, 0.0
    %1785 = vadd.xlane.f32.xlu0 %v1784
    %v1786 = vpop.xlane.xlu0 %1785
    %v1787 = vsel %vm33, %v1783, 0.0
    %1788 = vadd.xlane.f32.xlu0 %v1787
    %v1789 = vpop.xlane.xlu0 %1788
    %v1790 = vrcp.pop 32.0
    %v1791 = vmul.f32 %v1786, %v1790
    %v1792 = vmul.f32 %v1789, %v1790
    %v1793 = vsub.f32 %v1782, %v1791
    %v1794 = vsub.f32 %v1783, %v1792
    %v1795 = vmul.f32 %v1793, %v1793
    %v1796 = vmul.f32 %v1794, %v1794
    %v1797 = vsel %vm33, %v1795, 0.0
    %1798 = vadd.xlane.f32.xlu0 %v1797
    %v1799 = vpop.xlane.xlu0 %1798
    %v1800 = vsel %vm33, %v1796, 0.0
    %1801 = vadd.xlane.f32.xlu0 %v1800
    %v1802 = vpop.xlane.xlu0 %1801
    %v1803 = vmul.f32 %v1799, %v1790
    %v1804 = vmul.f32 %v1802, %v1790
    %v1805 = vadd.f32 %v1803, 1e-05
    %v1806 = vadd.f32 %v1804, 1e-05
    %v1807 = vrsqrt.pop %v1805
    %v1808 = vrsqrt.pop %v1806
    %v1809 = vmul.f32 %v1793, %v1807
    %v1810 = vmul.f32 %v1794, %v1808
    %v1811 = vlaneseq
    %v1812 = vshrl.u32 %v1811, 7
    %v1813 = vsub.s32 2, %v1812
    %v1814 = vrot.slane %v28, %v1813
    %v1815 = vmul.f32 %v1809, %v1814
    %v1816 = vmul.f32 %v1810, %v1814
    %v1817 = vlaneseq
    %v1818 = vshrl.u32 %v1817, 7
    %v1819 = vsub.s32 3, %v1818
    %v1820 = vrot.slane %v28, %v1819
    %v1821 = vadd.f32 %v1815, %v1820
    %v1822 = vadd.f32 %v1816, %v1820
    %v1823 = vlaneseq
    %v1824 = vshrl.u32 %v1823, 7
    %v1825 = vsub.s32 4, %v1824
    %v1826 = vrot.slane %v28, %v1825
    %v1828 = vsel %vm33, %v1821, 0
    %v1831 = vsel %vm33, %v1822, 0
    %1833 = vmatprep.subr.mxu0 0.0
    %1834 = vmatpush1.msra.mxu0 0.0
    %1835 = vmatprep.subr.mxu0 0.0
    %1836 = vmatpush1.msra.mxu0 0.0
    %1837 = vmatprep.subr.mxu0 0.0
    %1838 = vmatpush1.msra.mxu0 0.0
    %1839 = vmatprep.subr.mxu0 0.0
    %1840 = vmatpush1.msra.mxu0 0.0
    %1841 = vmatprep.subr.mxu0 0.0
    %1842 = vmatpush1.msra.mxu0 0.0
    %1843 = vmatprep.subr.mxu0 0.0
    %1844 = vmatpush1.msra.mxu0 0.0
    %1845 = vmatprep.subr.mxu0 0.0
    %1846 = vmatpush1.msra.mxu0 0.0
    %1847 = vmatprep.subr.mxu0 0.0
    %1848 = vmatpush1.msra.mxu0 0.0
    %1849 = vmatprep.subr.mxu0 0.0
    %1850 = vmatpush1.msra.mxu0 0.0
    %1851 = vmatprep.subr.mxu0 0.0
    %1852 = vmatpush1.msra.mxu0 0.0
    %1853 = vmatprep.subr.mxu0 0.0
    %1854 = vmatpush1.msra.mxu0 0.0
    %1855 = vmatprep.subr.mxu0 0.0
    %1856 = vmatpush1.msra.mxu0 0.0
    %1857 = vmatprep.subr.mxu0 0.0
    %1858 = vmatpush1.msra.mxu0 %v27
    %1859 = vmatprep.subr.mxu0 0.0
    %1860 = vmatpush1.msra.mxu0 %v25
    %1861 = vmatprep.subr.mxu0 0.0
    %1862 = vmatpush1.msra.mxu0 %v23
    %1863 = vmatprep.subr.mxu0 0.0
    %1864 = vmatpush1.msra.mxu0 %v21
    %1865 = vmatprep.subr.mxu0 0.0
    %1866 = vmatpush2.msra.mxu0 0.0
    %1867 = vmatprep.subr.mxu0 0.0
    %1868 = vmatpush2.msra.mxu0 0.0
    %1869 = vmatprep.subr.mxu0 0.0
    %1870 = vmatpush2.msra.mxu0 0.0
    %1871 = vmatprep.subr.mxu0 0.0
    %1872 = vmatpush2.msra.mxu0 0.0
    %1873 = vmatprep.subr.mxu0 0.0
    %1874 = vmatpush2.msra.mxu0 0.0
    %1875 = vmatprep.subr.mxu0 0.0
    %1876 = vmatpush2.msra.mxu0 0.0
    %1877 = vmatprep.subr.mxu0 0.0
    %1878 = vmatpush2.msra.mxu0 0.0
    %1879 = vmatprep.subr.mxu0 0.0
    %1880 = vmatpush2.msra.mxu0 0.0
    %1881 = vmatprep.subr.mxu0 0.0
    %1882 = vmatpush2.msra.mxu0 0.0
    %1883 = vmatprep.subr.mxu0 0.0
    %1884 = vmatpush2.msra.mxu0 0.0
    %1885 = vmatprep.subr.mxu0 0.0
    %1886 = vmatpush2.msra.mxu0 0.0
    %1887 = vmatprep.subr.mxu0 0.0
    %1888 = vmatpush2.msra.mxu0 0.0
    %1889 = vmatprep.subr.mxu0 0.0
    %1890 = vmatpush2.msra.mxu0 0.0
    %1891 = vmatprep.subr.mxu0 0.0
    %1892 = vmatpush2.msra.mxu0 0.0
    %1893 = vmatprep.subr.mxu0 0.0
    %1894 = vmatpush2.msra.mxu0 0.0
    %1895 = vmatprep.subr.mxu0 0.0
    %1896 = vmatpush2.msra.mxu0 0.0
    %1897 = vmatprep.mubr.f32.mxu0 0.0
    %1898 = vmatmul.mubr.f32.gmra.mxu0 %v1828
    %v1899 = vpop.f32.mrf.mxu0
    %v1900 = vadd.f32 %v1826, %v1899
    %v1901 = vpop.f32.mrf.mxu0
    %1902 = vmatprep.mubr.f32.mxu0 0.0
    %1903 = vmatmul.mubr.f32.gmra.mxu0 %v1831
    %v1904 = vpop.f32.mrf.mxu0
    %v1905 = vadd.f32 %v1826, %v1904
    %v1906 = vpop.f32.mrf.mxu0
    %1907 = vdwg.mxu0
    %v1908 = vmax.f32 %v1900, 0.0
    %v1909 = vmax.f32 %v1905, 0.0
    %v1910 = vld [vmem:[%s2] sm:$0xff]
    %v1911 = vld [vmem:[%s2 + $0x8] sm:$0xff]
    %v1912 = vld [vmem:[%s2 + $0x10] sm:$0xff]
    %v1913 = vld [vmem:[%s2 + $0x18] sm:$0xff]
    %v1914 = vld [vmem:[%s2 + $0x20] sm:$0xff]
    %v1915 = vld [vmem:[%s2 + $0x28] sm:$0xff]
    %v1916 = vld [vmem:[%s2 + $0x30] sm:$0xff]
    %v1917 = vld [vmem:[%s2 + $0x38] sm:$0xff]
    %v1918 = vlaneseq
    %v1919 = vshrl.u32 %v1918, 7
    %v1920 = vsub.s32 5, %v1919
    %v1921 = vrot.slane %v28, %v1920
    %vm1922 = vcmask 523264
    %v1924 = vsel %vm1922, %v1908, 0
    %v1927 = vsel %vm1922, %v1909, 0
    %1929 = vmatprep.subr.mxu0 0.0
    %1930 = vmatpush1.msra.mxu0 0.0
    %1931 = vmatprep.subr.mxu0 0.0
    %1932 = vmatpush1.msra.mxu0 0.0
    %1933 = vmatprep.subr.mxu0 0.0
    %1934 = vmatpush1.msra.mxu0 0.0
    %1935 = vmatprep.subr.mxu0 0.0
    %1936 = vmatpush1.msra.mxu0 0.0
    %1937 = vmatprep.subr.mxu0 0.0
    %1938 = vmatpush1.msra.mxu0 0.0
    %1939 = vmatprep.subr.mxu0 0.0
    %1940 = vmatpush1.msra.mxu0 0.0
    %1941 = vmatprep.subr.mxu0 0.0
    %1942 = vmatpush1.msra.mxu0 0.0
    %1943 = vmatprep.subr.mxu0 0.0
    %1944 = vmatpush1.msra.mxu0 0.0
    %1945 = vmatprep.subr.mxu0 0.0
    %1946 = vmatpush1.msra.mxu0 %v1917
    %1947 = vmatprep.subr.mxu0 0.0
    %1948 = vmatpush1.msra.mxu0 %v1916
    %1949 = vmatprep.subr.mxu0 0.0
    %1950 = vmatpush1.msra.mxu0 %v1915
    %1951 = vmatprep.subr.mxu0 0.0
    %1952 = vmatpush1.msra.mxu0 %v1914
    %1953 = vmatprep.subr.mxu0 0.0
    %1954 = vmatpush1.msra.mxu0 %v1913
    %1955 = vmatprep.subr.mxu0 0.0
    %1956 = vmatpush1.msra.mxu0 %v1912
    %1957 = vmatprep.subr.mxu0 0.0
    %1958 = vmatpush1.msra.mxu0 %v1911
    %1959 = vmatprep.subr.mxu0 0.0
    %1960 = vmatpush1.msra.mxu0 %v1910
    %1961 = vmatprep.subr.mxu0 0.0
    %1962 = vmatpush2.msra.mxu0 0.0
    %1963 = vmatprep.subr.mxu0 0.0
    %1964 = vmatpush2.msra.mxu0 0.0
    %1965 = vmatprep.subr.mxu0 0.0
    %1966 = vmatpush2.msra.mxu0 0.0
    %1967 = vmatprep.subr.mxu0 0.0
    %1968 = vmatpush2.msra.mxu0 0.0
    %1969 = vmatprep.subr.mxu0 0.0
    %1970 = vmatpush2.msra.mxu0 0.0
    %1971 = vmatprep.subr.mxu0 0.0
    %1972 = vmatpush2.msra.mxu0 0.0
    %1973 = vmatprep.subr.mxu0 0.0
    %1974 = vmatpush2.msra.mxu0 0.0
    %1975 = vmatprep.subr.mxu0 0.0
    %1976 = vmatpush2.msra.mxu0 0.0
    %1977 = vmatprep.subr.mxu0 0.0
    %1978 = vmatpush2.msra.mxu0 0.0
    %1979 = vmatprep.subr.mxu0 0.0
    %1980 = vmatpush2.msra.mxu0 0.0
    %1981 = vmatprep.subr.mxu0 0.0
    %1982 = vmatpush2.msra.mxu0 0.0
    %1983 = vmatprep.subr.mxu0 0.0
    %1984 = vmatpush2.msra.mxu0 0.0
    %1985 = vmatprep.subr.mxu0 0.0
    %1986 = vmatpush2.msra.mxu0 0.0
    %1987 = vmatprep.subr.mxu0 0.0
    %1988 = vmatpush2.msra.mxu0 0.0
    %1989 = vmatprep.subr.mxu0 0.0
    %1990 = vmatpush2.msra.mxu0 0.0
    %1991 = vmatprep.subr.mxu0 0.0
    %1992 = vmatpush2.msra.mxu0 0.0
    %1993 = vmatprep.mubr.f32.mxu0 0.0
    %1994 = vmatmul.mubr.f32.gmra.mxu0 %v1924
    %v1995 = vpop.f32.mrf.mxu0
    %v1996 = vadd.f32 %v1921, %v1995
    %v1997 = vpop.f32.mrf.mxu0
    %1998 = vmatprep.mubr.f32.mxu0 0.0
    %1999 = vmatmul.mubr.f32.gmra.mxu0 %v1927
    %v2000 = vpop.f32.mrf.mxu0
    %v2001 = vadd.f32 %v1921, %v2000
    %v2002 = vpop.f32.mrf.mxu0
    %2003 = vdwg.mxu0
    %v2004 = vsel %vm33, %v1996, 0.0
    %2005 = vadd.xlane.f32.xlu0 %v2004
    %v2006 = vpop.xlane.xlu0 %2005
    %v2007 = vsel %vm33, %v2001, 0.0
    %2008 = vadd.xlane.f32.xlu0 %v2007
    %v2009 = vpop.xlane.xlu0 %2008
    %v2010 = vmul.f32 %v2006, %v1790
    %v2011 = vmul.f32 %v2009, %v1790
    %v2012 = vsub.f32 %v1996, %v2010
    %v2013 = vsub.f32 %v2001, %v2011
    %v2014 = vmul.f32 %v2012, %v2012
    %v2015 = vmul.f32 %v2013, %v2013
    %v2016 = vsel %vm33, %v2014, 0.0
    %2017 = vadd.xlane.f32.xlu0 %v2016
    %v2018 = vpop.xlane.xlu0 %2017
    %v2019 = vsel %vm33, %v2015, 0.0
    %2020 = vadd.xlane.f32.xlu0 %v2019
    %v2021 = vpop.xlane.xlu0 %2020
    %v2022 = vmul.f32 %v2018, %v1790
    %v2023 = vmul.f32 %v2021, %v1790
    %v2024 = vadd.f32 %v2022, 1e-05
    %v2025 = vadd.f32 %v2023, 1e-05
    %v2026 = vrsqrt.pop %v2024
    %v2027 = vrsqrt.pop %v2025
    %v2028 = vmul.f32 %v2012, %v2026
    %v2029 = vmul.f32 %v2013, %v2027
    %v2030 = vlaneseq
    %v2031 = vshrl.u32 %v2030, 7
    %v2032 = vsub.s32 6, %v2031
    %v2033 = vrot.slane %v28, %v2032
    %v2034 = vmul.f32 %v2028, %v2033
    %v2035 = vmul.f32 %v2029, %v2033
    %v2036 = vlaneseq
    %v2037 = vshrl.u32 %v2036, 7
    %v2038 = vsub.s32 7, %v2037
    %v2039 = vrot.slane %v28, %v2038
    %v2040 = vadd.f32 %v2034, %v2039
    %v2041 = vadd.f32 %v2035, %v2039
    %2042 = vst.msk [vmem:[#allocation2] sm:$0xff] %vm33, %v2040
    %2043 = vst.msk [vmem:[#allocation2 + $0x8] sm:$0xff] %vm33, %v2041
    // Predicated region
    $region18: #{tpu_custom_call.1} parent=1 // pred_check
      _
    $region19: #{tpu_custom_call.1} parent=1 // pred_check_branch
      %2045 = sbr.rel (0) target = $region21
    $region20: #{tpu_custom_call.1} parent=1 // pred_region
      %s2047 = ssub.s32 256, 256
      %2048 = vsyncadd [#allocation3], %s2047
      %s2049 = sshll.u32 [#allocation2], 4
      %s2050 = int_to_ptr.vmem [resolvable:$true] %s2049
      %2055 = dma.vmem_to_hbm [thread:$0]  %s2050, 256, %s4, [#allocation3], 128, 128, 8
    $region21: #{tpu_custom_call.1} parent=1 // pred_fallthru
      _
    // Predicated region
    $region22: #{tpu_custom_call.1} parent=1 // pred_check
      _
    $region23: #{tpu_custom_call.1} parent=1 // pred_check_branch
      %2057 = sbr.rel (0) target = $region25
    $region24: #{tpu_custom_call.1} parent=1 // pred_region
      %2058 = dma.done [#allocation3], 256
    $region25: #{tpu_custom_call.1} parent=1 // pred_fallthru
      _
    %2059 = vsyncpa [#allocation3], 1

</llo_original>
